<compile_context>
chip_gen: v5e
topology: v5e:2x2
jax: 0.10.0
libtpu: 0.0.40
codegen_flags: <defaults>
</compile_context>

<pallas_src>
import jax
import jax.numpy as jnp
from jax import lax
from jax.experimental import pallas as pl
from jax.experimental.pallas import tpu as pltpu


def _gru_kernel(x_ref, w_ih_ref, w_hh_ref, b_comb_ref, b_hn_ref,
                w_out_ref, b_out_ref, y_ref,
                gi_r_scr, gi_z_scr, gi_n_scr, hist_scr):
    S, Bp, I = x_ref.shape
    H = w_hh_ref.shape[-1]
    O = w_out_ref.shape[-1]

    # ---- Hoisted input projection: one (S*Bp, I) @ (I, H) matmul per gate. ----
    # b_comb already holds (b_ir + b_hr), (b_iz + b_hz), b_in.
    x2d = x_ref[...].reshape(S * Bp, I)
    gi_r_scr[...] = (jnp.dot(x2d, w_ih_ref[0], preferred_element_type=jnp.float32)
                     + b_comb_ref[0])
    gi_z_scr[...] = (jnp.dot(x2d, w_ih_ref[1], preferred_element_type=jnp.float32)
                     + b_comb_ref[1])
    gi_n_scr[...] = (jnp.dot(x2d, w_ih_ref[2], preferred_element_type=jnp.float32)
                     + b_comb_ref[2])

    # Recurrent weights stay live across the whole loop; broadcast hoisted.
    w_hr = w_hh_ref[0]
    w_hz = w_hh_ref[1]
    w_hn = w_hh_ref[2]
    b_hn = jnp.broadcast_to(b_hn_ref[...], (Bp, H))

    def step(t, h):
        start = pl.multiple_of(t * Bp, Bp)
        rows = pl.ds(start, Bp)
        # Three independent (Bp,H)@(H,H) MXU pushes; pops overlap with VPU/EUP.
        gh_r = jnp.dot(h, w_hr, preferred_element_type=jnp.float32)
        gh_z = jnp.dot(h, w_hz, preferred_element_type=jnp.float32)
        gh_n = jnp.dot(h, w_hn, preferred_element_type=jnp.float32)
        r = jax.nn.sigmoid(gi_r_scr[rows, :] + gh_r)
        z = jax.nn.sigmoid(gi_z_scr[rows, :] + gh_z)
        n = jnp.tanh(gi_n_scr[rows, :] + r * (gh_n + b_hn))
        h_new = n + z * (h - n)            # == (1 - z) * n + z * h
        hist_scr[rows, :] = h_new
        return h_new

    h0 = jnp.zeros((Bp, H), jnp.float32)
    lax.fori_loop(0, S, step, h0, unroll=True)

    # ---- Fused output Linear over the whole sequence, single slab store. ----
    y = (jnp.dot(hist_scr[...], w_out_ref[...], preferred_element_type=jnp.float32)
         + b_out_ref[...])
    y_ref[...] = y.reshape(S, Bp, O)


def gru_model_forward(x, params):
    """x: (B, S, I) float32 (batch_first, like PyTorch). Returns (B, S, O)."""
    w_ih, w_hh, b_ih, b_hh, w_out, b_out = params
    B, S, I = x.shape
    H = w_hh.shape[0] // 3
    O = w_out.shape[0]

    SUB = 8
    Bp = ((B + SUB - 1) // SUB) * SUB  # pad batch (sublane dim) to multiple of 8

    w_ih = jnp.asarray(w_ih, jnp.float32)
    w_hh = jnp.asarray(w_hh, jnp.float32)
    b_ih = jnp.asarray(b_ih, jnp.float32)
    b_hh = jnp.asarray(b_hh, jnp.float32)
    w_out = jnp.asarray(w_out, jnp.float32)
    b_out = jnp.asarray(b_out, jnp.float32)

    # Gate-separated, transposed weights (kernel computes x @ W).
    w_ih_g = jnp.stack([w_ih[0:H].T, w_ih[H:2 * H].T, w_ih[2 * H:3 * H].T])  # (3, I, H)
    w_hh_g = jnp.stack([w_hh[0:H].T, w_hh[H:2 * H].T, w_hh[2 * H:3 * H].T])  # (3, H, H)
    # r/z gates: fold b_ih + b_hh into the hoisted input projection.
    # n gate: only b_in is hoisted; b_hn must stay inside r * (.).
    b_comb = jnp.stack([
        (b_ih[0:H] + b_hh[0:H]).reshape(1, H),
        (b_ih[H:2 * H] + b_hh[H:2 * H]).reshape(1, H),
        b_ih[2 * H:3 * H].reshape(1, H),
    ])                                                                       # (3, 1, H)
    b_hn = b_hh[2 * H:3 * H].reshape(1, H)
    w_out_t = w_out.T                                                        # (H, O)
    b_out_r = b_out.reshape(1, O)

    # (B,S,I) -> (S,B,I), pad batch to Bp.
    x_sbi = jnp.transpose(x.astype(jnp.float32), (1, 0, 2))
    x_p = jnp.pad(x_sbi, ((0, 0), (0, Bp - B), (0, 0)))

    y_p = pl.pallas_call(
        _gru_kernel,
        out_shape=jax.ShapeDtypeStruct((S, Bp, O), jnp.float32),
        in_specs=[pl.BlockSpec(memory_space=pltpu.MemorySpace.VMEM)] * 7,
        out_specs=pl.BlockSpec(memory_space=pltpu.MemorySpace.VMEM),
        scratch_shapes=[
            pltpu.VMEM((S * Bp, H), jnp.float32),   # gi_r (hoisted x-projection)
            pltpu.VMEM((S * Bp, H), jnp.float32),   # gi_z
            pltpu.VMEM((S * Bp, H), jnp.float32),   # gi_n
            pltpu.VMEM((S * Bp, H), jnp.float32),   # h_t history
        ],
    )(x_p, w_ih_g, w_hh_g, b_comb, b_hn, w_out_t, b_out_r)

    return jnp.transpose(y_p[:, :B, :], (1, 0, 2))                           # (B, S, O)


def _reference_forward(x, params):
    """Pure-JAX reference (PyTorch GRU semantics) for verification."""
    w_ih, w_hh, b_ih, b_hh, w_out, b_out = params
    H = w_hh.shape[0] // 3
    B = x.shape[0]

    def step(h, x_t):
        gi = x_t @ w_ih.T + b_ih
        gh = h @ w_hh.T + b_hh
        gi_r, gi_z, gi_n = gi[:, :H], gi[:, H:2 * H], gi[:, 2 * H:]
        gh_r, gh_z, gh_n = gh[:, :H], gh[:, H:2 * H], gh[:, 2 * H:]
        r = jax.nn.sigmoid(gi_r + gh_r)
        z = jax.nn.sigmoid(gi_z + gh_z)
        n = jnp.tanh(gi_n + r * gh_n)
        h_new = (1.0 - z) * n + z * h
        return h_new, h_new

    h0 = jnp.zeros((B, H), jnp.float32)
    _, hs = jax.lax.scan(step, h0, jnp.transpose(x, (1, 0, 2)))   # (S, B, H)
    hs = jnp.transpose(hs, (1, 0, 2))                              # (B, S, H)
    return hs @ w_out.T + b_out


def init_params(key, input_num, hidden_num, output_num):
    """Deterministic PyTorch-like uniform(-1/sqrt(H), 1/sqrt(H)) init."""
    ks = jax.random.split(key, 6)
    bound = 1.0 / jnp.sqrt(jnp.float32(hidden_num))
    u = lambda k, shape: jax.random.uniform(k, shape, jnp.float32, -bound, bound)
    w_ih = u(ks[0], (3 * hidden_num, input_num))
    w_hh = u(ks[1], (3 * hidden_num, hidden_num))
    b_ih = u(ks[2], (3 * hidden_num,))
    b_hh = u(ks[3], (3 * hidden_num,))
    w_out = u(ks[4], (output_num, hidden_num))
    b_out = u(ks[5], (output_num,))
    return (w_ih, w_hh, b_ih, b_hh, w_out, b_out)


if __name__ == "__main__":
    key = jax.random.PRNGKey(0)
    k_x, k_p = jax.random.split(key)

    B, S, I, H, O = 2, 8, 16, 32, 8   # batch, seq, input_num, hidden_num, output_num
    x = jax.random.normal(k_x, (B, S, I), jnp.float32)
    params = init_params(k_p, I, H, O)

    # TODO(synk): the PyTorch module also caches self.hidden (final h_n) as
    # module state; only the forward output tensor is reproduced here.
    y = jax.block_until_ready(gru_model_forward(x, params))
    y_ref = jax.block_until_ready(_reference_forward(x, params))

    assert y.shape == (B, S, O)
    assert jnp.allclose(y, y_ref, atol=1e-4, rtol=1e-4), "mismatch vs reference"

    print("KERNEL_OK")
</pallas_src>

<mosaic_0001>
module attributes {stable_mosaic.version = 11 : i64} {
  func.func @_gru_kernel(%arg0: memref<8x8x16xf32, #tpu.memory_space<vmem>>, %arg1: memref<3x16x32xf32, #tpu.memory_space<vmem>>, %arg2: memref<3x32x32xf32, #tpu.memory_space<vmem>>, %arg3: memref<3x1x32xf32, #tpu.memory_space<vmem>>, %arg4: memref<1x32xf32, #tpu.memory_space<vmem>>, %arg5: memref<32x8xf32, #tpu.memory_space<vmem>>, %arg6: memref<1x8xf32, #tpu.memory_space<vmem>>, %arg7: memref<8x8x8xf32, #tpu.memory_space<vmem>>, %arg8: memref<64x32xf32, #tpu.memory_space<vmem>>, %arg9: memref<64x32xf32, #tpu.memory_space<vmem>>, %arg10: memref<64x32xf32, #tpu.memory_space<vmem>>, %arg11: memref<64x32xf32, #tpu.memory_space<vmem>>) attributes {dimension_semantics = [], scalar_prefetch = 0 : i64, scratch_operands = 4 : i64, tpu.core_type = #tpu.core_type<tc>} {
    %c0 = arith.constant 0 : index
    %c0_0 = arith.constant 0 : index
    %c0_1 = arith.constant 0 : index
    %0 = vector.load %arg0[%c0, %c0_0, %c0_1] : memref<8x8x16xf32, #tpu.memory_space<vmem>>, vector<8x8x16xf32>
    %1 = vector.shape_cast %0 : vector<8x8x16xf32> to vector<64x16xf32>
    %c0_2 = arith.constant 0 : index
    %c0_3 = arith.constant 0 : index
    %c0_4 = arith.constant 0 : index
    %2 = vector.load %arg1[%c0_2, %c0_3, %c0_4] : memref<3x16x32xf32, #tpu.memory_space<vmem>>, vector<1x16x32xf32>
    %3 = vector.shape_cast %2 : vector<1x16x32xf32> to vector<16x32xf32>
    %cst = arith.constant dense<0.000000e+00> : vector<64x32xf32>
    %4 = tpu.matmul %1, %3, %cst {dimension_numbers = #tpu.dot_dimension_numbers<[1], [0], [0], [1], [0, 0, 1, 1], [], []>} : vector<64x16xf32>, vector<16x32xf32>, vector<64x32xf32> -> vector<64x32xf32>
    %c0_5 = arith.constant 0 : index
    %c0_6 = arith.constant 0 : index
    %c0_7 = arith.constant 0 : index
    %5 = vector.load %arg3[%c0_5, %c0_6, %c0_7] : memref<3x1x32xf32, #tpu.memory_space<vmem>>, vector<1x1x32xf32>
    %6 = vector.shape_cast %5 : vector<1x1x32xf32> to vector<1x32xf32>
    %7 = vector.broadcast %6 : vector<1x32xf32> to vector<64x32xf32>
    %8 = arith.addf %4, %7 : vector<64x32xf32>
    %c0_8 = arith.constant 0 : index
    %c0_9 = arith.constant 0 : index
    %9 = vector.load %arg8[%c0_8, %c0_9] : memref<64x32xf32, #tpu.memory_space<vmem>>, vector<64x32xf32>
    tpu.vector_store %arg8[%c0_8, %c0_9], %8 {strides = array<i32>} : memref<64x32xf32, #tpu.memory_space<vmem>>, vector<64x32xf32>,
    %c1 = arith.constant 1 : index
    %c0_10 = arith.constant 0 : index
    %c0_11 = arith.constant 0 : index
    %10 = vector.load %arg1[%c1, %c0_10, %c0_11] : memref<3x16x32xf32, #tpu.memory_space<vmem>>, vector<1x16x32xf32>
    %11 = vector.shape_cast %10 : vector<1x16x32xf32> to vector<16x32xf32>
    %cst_12 = arith.constant dense<0.000000e+00> : vector<64x32xf32>
    %12 = tpu.matmul %1, %11, %cst_12 {dimension_numbers = #tpu.dot_dimension_numbers<[1], [0], [0], [1], [0, 0, 1, 1], [], []>} : vector<64x16xf32>, vector<16x32xf32>, vector<64x32xf32> -> vector<64x32xf32>
    %c1_13 = arith.constant 1 : index
    %c0_14 = arith.constant 0 : index
    %c0_15 = arith.constant 0 : index
    %13 = vector.load %arg3[%c1_13, %c0_14, %c0_15] : memref<3x1x32xf32, #tpu.memory_space<vmem>>, vector<1x1x32xf32>
    %14 = vector.shape_cast %13 : vector<1x1x32xf32> to vector<1x32xf32>
    %15 = vector.broadcast %14 : vector<1x32xf32> to vector<64x32xf32>
    %16 = arith.addf %12, %15 : vector<64x32xf32>
    %c0_16 = arith.constant 0 : index
    %c0_17 = arith.constant 0 : index
    %17 = vector.load %arg9[%c0_16, %c0_17] : memref<64x32xf32, #tpu.memory_space<vmem>>, vector<64x32xf32>
    tpu.vector_store %arg9[%c0_16, %c0_17], %16 {strides = array<i32>} : memref<64x32xf32, #tpu.memory_space<vmem>>, vector<64x32xf32>,
    %c2 = arith.constant 2 : index
    %c0_18 = arith.constant 0 : index
    %c0_19 = arith.constant 0 : index
    %18 = vector.load %arg1[%c2, %c0_18, %c0_19] : memref<3x16x32xf32, #tpu.memory_space<vmem>>, vector<1x16x32xf32>
    %19 = vector.shape_cast %18 : vector<1x16x32xf32> to vector<16x32xf32>
    %cst_20 = arith.constant dense<0.000000e+00> : vector<64x32xf32>
    %20 = tpu.matmul %1, %19, %cst_20 {dimension_numbers = #tpu.dot_dimension_numbers<[1], [0], [0], [1], [0, 0, 1, 1], [], []>} : vector<64x16xf32>, vector<16x32xf32>, vector<64x32xf32> -> vector<64x32xf32>
    %c2_21 = arith.constant 2 : index
    %c0_22 = arith.constant 0 : index
    %c0_23 = arith.constant 0 : index
    %21 = vector.load %arg3[%c2_21, %c0_22, %c0_23] : memref<3x1x32xf32, #tpu.memory_space<vmem>>, vector<1x1x32xf32>
    %22 = vector.shape_cast %21 : vector<1x1x32xf32> to vector<1x32xf32>
    %23 = vector.broadcast %22 : vector<1x32xf32> to vector<64x32xf32>
    %24 = arith.addf %20, %23 : vector<64x32xf32>
    %c0_24 = arith.constant 0 : index
    %c0_25 = arith.constant 0 : index
    %25 = vector.load %arg10[%c0_24, %c0_25] : memref<64x32xf32, #tpu.memory_space<vmem>>, vector<64x32xf32>
    tpu.vector_store %arg10[%c0_24, %c0_25], %24 {strides = array<i32>} : memref<64x32xf32, #tpu.memory_space<vmem>>, vector<64x32xf32>,
    %c0_26 = arith.constant 0 : index
    %c0_27 = arith.constant 0 : index
    %c0_28 = arith.constant 0 : index
    %26 = vector.load %arg2[%c0_26, %c0_27, %c0_28] : memref<3x32x32xf32, #tpu.memory_space<vmem>>, vector<1x32x32xf32>
    %27 = vector.shape_cast %26 : vector<1x32x32xf32> to vector<32x32xf32>
    %c1_29 = arith.constant 1 : index
    %c0_30 = arith.constant 0 : index
    %c0_31 = arith.constant 0 : index
    %28 = vector.load %arg2[%c1_29, %c0_30, %c0_31] : memref<3x32x32xf32, #tpu.memory_space<vmem>>, vector<1x32x32xf32>
    %29 = vector.shape_cast %28 : vector<1x32x32xf32> to vector<32x32xf32>
    %c2_32 = arith.constant 2 : index
    %c0_33 = arith.constant 0 : index
    %c0_34 = arith.constant 0 : index
    %30 = vector.load %arg2[%c2_32, %c0_33, %c0_34] : memref<3x32x32xf32, #tpu.memory_space<vmem>>, vector<1x32x32xf32>
    %31 = vector.shape_cast %30 : vector<1x32x32xf32> to vector<32x32xf32>
    %c0_35 = arith.constant 0 : index
    %c0_36 = arith.constant 0 : index
    %32 = vector.load %arg4[%c0_35, %c0_36] : memref<1x32xf32, #tpu.memory_space<vmem>>, vector<1x32xf32>
    %33 = vector.shape_cast %32 : vector<1x32xf32> to vector<1x32xf32>
    %34 = vector.broadcast %33 : vector<1x32xf32> to vector<8x32xf32>
    %cst_37 = arith.constant 0.000000e+00 : f32
    %35 = vector.broadcast %cst_37 : f32 to vector<8x32xf32>
    %c0_i32 = arith.constant 0 : i32
    %c8_i32 = arith.constant 8 : i32
    %36 = arith.muli %c0_i32, %c8_i32 : i32
    %37 = tpu.assume_multiple %36, 8 : i32
    %cst_38 = arith.constant dense<0.000000e+00> : vector<8x32xf32>
    %38 = tpu.matmul %35, %27, %cst_38 {dimension_numbers = #tpu.dot_dimension_numbers<[1], [0], [0], [1], [0, 0, 1, 1], [], []>} : vector<8x32xf32>, vector<32x32xf32>, vector<8x32xf32> -> vector<8x32xf32>
    %cst_39 = arith.constant dense<0.000000e+00> : vector<8x32xf32>
    %39 = tpu.matmul %35, %29, %cst_39 {dimension_numbers = #tpu.dot_dimension_numbers<[1], [0], [0], [1], [0, 0, 1, 1], [], []>} : vector<8x32xf32>, vector<32x32xf32>, vector<8x32xf32> -> vector<8x32xf32>
    %cst_40 = arith.constant dense<0.000000e+00> : vector<8x32xf32>
    %40 = tpu.matmul %35, %31, %cst_40 {dimension_numbers = #tpu.dot_dimension_numbers<[1], [0], [0], [1], [0, 0, 1, 1], [], []>} : vector<8x32xf32>, vector<32x32xf32>, vector<8x32xf32> -> vector<8x32xf32>
    %41 = arith.index_cast %37 : i32 to index
    %c0_41 = arith.constant 0 : index
    %42 = vector.load %arg8[%41, %c0_41] : memref<64x32xf32, #tpu.memory_space<vmem>>, vector<8x32xf32>
    %43 = arith.addf %42, %38 : vector<8x32xf32>
    %44 = arith.negf %43 : vector<8x32xf32>
    %45 = math.exp %44 : vector<8x32xf32>
    %cst_42 = arith.constant 1.000000e+00 : f32
    %46 = vector.broadcast %cst_42 : f32 to vector<8x32xf32>
    %47 = arith.addf %46, %45 : vector<8x32xf32>
    %48 = arith.divf %46, %47 : vector<8x32xf32>
    %49 = arith.index_cast %37 : i32 to index
    %c0_43 = arith.constant 0 : index
    %50 = vector.load %arg9[%49, %c0_43] : memref<64x32xf32, #tpu.memory_space<vmem>>, vector<8x32xf32>
    %51 = arith.addf %50, %39 : vector<8x32xf32>
    %52 = arith.negf %51 : vector<8x32xf32>
    %53 = math.exp %52 : vector<8x32xf32>
    %cst_44 = arith.constant 1.000000e+00 : f32
    %54 = vector.broadcast %cst_44 : f32 to vector<8x32xf32>
    %55 = arith.addf %54, %53 : vector<8x32xf32>
    %56 = arith.divf %54, %55 : vector<8x32xf32>
    %57 = arith.index_cast %37 : i32 to index
    %c0_45 = arith.constant 0 : index
    %58 = vector.load %arg10[%57, %c0_45] : memref<64x32xf32, #tpu.memory_space<vmem>>, vector<8x32xf32>
    %59 = arith.addf %40, %34 : vector<8x32xf32>
    %60 = arith.mulf %48, %59 : vector<8x32xf32>
    %61 = arith.addf %58, %60 : vector<8x32xf32>
    %62 = math.tanh %61 : vector<8x32xf32>
    %63 = arith.subf %35, %62 : vector<8x32xf32>
    %64 = arith.mulf %56, %63 : vector<8x32xf32>
    %65 = arith.addf %62, %64 : vector<8x32xf32>
    %66 = arith.index_cast %37 : i32 to index
    %c0_46 = arith.constant 0 : index
    %67 = vector.load %arg11[%66, %c0_46] : memref<64x32xf32, #tpu.memory_space<vmem>>, vector<8x32xf32>
    tpu.vector_store %arg11[%66, %c0_46], %65 {strides = array<i32>} : memref<64x32xf32, #tpu.memory_space<vmem>>, vector<8x32xf32>,
    %c1_i32 = arith.constant 1 : i32
    %c8_i32_47 = arith.constant 8 : i32
    %68 = arith.muli %c1_i32, %c8_i32_47 : i32
    %69 = tpu.assume_multiple %68, 8 : i32
    %cst_48 = arith.constant dense<0.000000e+00> : vector<8x32xf32>
    %70 = tpu.matmul %65, %27, %cst_48 {dimension_numbers = #tpu.dot_dimension_numbers<[1], [0], [0], [1], [0, 0, 1, 1], [], []>} : vector<8x32xf32>, vector<32x32xf32>, vector<8x32xf32> -> vector<8x32xf32>
    %cst_49 = arith.constant dense<0.000000e+00> : vector<8x32xf32>
    %71 = tpu.matmul %65, %29, %cst_49 {dimension_numbers = #tpu.dot_dimension_numbers<[1], [0], [0], [1], [0, 0, 1, 1], [], []>} : vector<8x32xf32>, vector<32x32xf32>, vector<8x32xf32> -> vector<8x32xf32>
    %cst_50 = arith.constant dense<0.000000e+00> : vector<8x32xf32>
    %72 = tpu.matmul %65, %31, %cst_50 {dimension_numbers = #tpu.dot_dimension_numbers<[1], [0], [0], [1], [0, 0, 1, 1], [], []>} : vector<8x32xf32>, vector<32x32xf32>, vector<8x32xf32> -> vector<8x32xf32>
    %73 = arith.index_cast %69 : i32 to index
    %c0_51 = arith.constant 0 : index
    %74 = vector.load %arg8[%73, %c0_51] : memref<64x32xf32, #tpu.memory_space<vmem>>, vector<8x32xf32>
    %75 = arith.addf %74, %70 : vector<8x32xf32>
    %76 = arith.negf %75 : vector<8x32xf32>
    %77 = math.exp %76 : vector<8x32xf32>
    %cst_52 = arith.constant 1.000000e+00 : f32
    %78 = vector.broadcast %cst_52 : f32 to vector<8x32xf32>
    %79 = arith.addf %78, %77 : vector<8x32xf32>
    %80 = arith.divf %78, %79 : vector<8x32xf32>
    %81 = arith.index_cast %69 : i32 to index
    %c0_53 = arith.constant 0 : index
    %82 = vector.load %arg9[%81, %c0_53] : memref<64x32xf32, #tpu.memory_space<vmem>>, vector<8x32xf32>
    %83 = arith.addf %82, %71 : vector<8x32xf32>
    %84 = arith.negf %83 : vector<8x32xf32>
    %85 = math.exp %84 : vector<8x32xf32>
    %cst_54 = arith.constant 1.000000e+00 : f32
    %86 = vector.broadcast %cst_54 : f32 to vector<8x32xf32>
    %87 = arith.addf %86, %85 : vector<8x32xf32>
    %88 = arith.divf %86, %87 : vector<8x32xf32>
    %89 = arith.index_cast %69 : i32 to index
    %c0_55 = arith.constant 0 : index
    %90 = vector.load %arg10[%89, %c0_55] : memref<64x32xf32, #tpu.memory_space<vmem>>, vector<8x32xf32>
    %91 = arith.addf %72, %34 : vector<8x32xf32>
    %92 = arith.mulf %80, %91 : vector<8x32xf32>
    %93 = arith.addf %90, %92 : vector<8x32xf32>
    %94 = math.tanh %93 : vector<8x32xf32>
    %95 = arith.subf %65, %94 : vector<8x32xf32>
    %96 = arith.mulf %88, %95 : vector<8x32xf32>
    %97 = arith.addf %94, %96 : vector<8x32xf32>
    %98 = arith.index_cast %69 : i32 to index
    %c0_56 = arith.constant 0 : index
    %99 = vector.load %arg11[%98, %c0_56] : memref<64x32xf32, #tpu.memory_space<vmem>>, vector<8x32xf32>
    tpu.vector_store %arg11[%98, %c0_56], %97 {strides = array<i32>} : memref<64x32xf32, #tpu.memory_space<vmem>>, vector<8x32xf32>,
    %c2_i32 = arith.constant 2 : i32
    %c8_i32_57 = arith.constant 8 : i32
    %100 = arith.muli %c2_i32, %c8_i32_57 : i32
    %101 = tpu.assume_multiple %100, 8 : i32
    %cst_58 = arith.constant dense<0.000000e+00> : vector<8x32xf32>
    %102 = tpu.matmul %97, %27, %cst_58 {dimension_numbers = #tpu.dot_dimension_numbers<[1], [0], [0], [1], [0, 0, 1, 1], [], []>} : vector<8x32xf32>, vector<32x32xf32>, vector<8x32xf32> -> vector<8x32xf32>
    %cst_59 = arith.constant dense<0.000000e+00> : vector<8x32xf32>
    %103 = tpu.matmul %97, %29, %cst_59 {dimension_numbers = #tpu.dot_dimension_numbers<[1], [0], [0], [1], [0, 0, 1, 1], [], []>} : vector<8x32xf32>, vector<32x32xf32>, vector<8x32xf32> -> vector<8x32xf32>
    %cst_60 = arith.constant dense<0.000000e+00> : vector<8x32xf32>
    %104 = tpu.matmul %97, %31, %cst_60 {dimension_numbers = #tpu.dot_dimension_numbers<[1], [0], [0], [1], [0, 0, 1, 1], [], []>} : vector<8x32xf32>, vector<32x32xf32>, vector<8x32xf32> -> vector<8x32xf32>
    %105 = arith.index_cast %101 : i32 to index
    %c0_61 = arith.constant 0 : index
    %106 = vector.load %arg8[%105, %c0_61] : memref<64x32xf32, #tpu.memory_space<vmem>>, vector<8x32xf32>
    %107 = arith.addf %106, %102 : vector<8x32xf32>
    %108 = arith.negf %107 : vector<8x32xf32>
    %109 = math.exp %108 : vector<8x32xf32>
    %cst_62 = arith.constant 1.000000e+00 : f32
    %110 = vector.broadcast %cst_62 : f32 to vector<8x32xf32>
    %111 = arith.addf %110, %109 : vector<8x32xf32>
    %112 = arith.divf %110, %111 : vector<8x32xf32>
    %113 = arith.index_cast %101 : i32 to index
    %c0_63 = arith.constant 0 : index
    %114 = vector.load %arg9[%113, %c0_63] : memref<64x32xf32, #tpu.memory_space<vmem>>, vector<8x32xf32>
    %115 = arith.addf %114, %103 : vector<8x32xf32>
    %116 = arith.negf %115 : vector<8x32xf32>
    %117 = math.exp %116 : vector<8x32xf32>
    %cst_64 = arith.constant 1.000000e+00 : f32
    %118 = vector.broadcast %cst_64 : f32 to vector<8x32xf32>
    %119 = arith.addf %118, %117 : vector<8x32xf32>
    %120 = arith.divf %118, %119 : vector<8x32xf32>
    %121 = arith.index_cast %101 : i32 to index
    %c0_65 = arith.constant 0 : index
    %122 = vector.load %arg10[%121, %c0_65] : memref<64x32xf32, #tpu.memory_space<vmem>>, vector<8x32xf32>
    %123 = arith.addf %104, %34 : vector<8x32xf32>
    %124 = arith.mulf %112, %123 : vector<8x32xf32>
    %125 = arith.addf %122, %124 : vector<8x32xf32>
    %126 = math.tanh %125 : vector<8x32xf32>
    %127 = arith.subf %97, %126 : vector<8x32xf32>
    %128 = arith.mulf %120, %127 : vector<8x32xf32>
    %129 = arith.addf %126, %128 : vector<8x32xf32>
    %130 = arith.index_cast %101 : i32 to index
    %c0_66 = arith.constant 0 : index
    %131 = vector.load %arg11[%130, %c0_66] : memref<64x32xf32, #tpu.memory_space<vmem>>, vector<8x32xf32>
    tpu.vector_store %arg11[%130, %c0_66], %129 {strides = array<i32>} : memref<64x32xf32, #tpu.memory_space<vmem>>, vector<8x32xf32>,
    %c3_i32 = arith.constant 3 : i32
    %c8_i32_67 = arith.constant 8 : i32
    %132 = arith.muli %c3_i32, %c8_i32_67 : i32
    %133 = tpu.assume_multiple %132, 8 : i32
    %cst_68 = arith.constant dense<0.000000e+00> : vector<8x32xf32>
    %134 = tpu.matmul %129, %27, %cst_68 {dimension_numbers = #tpu.dot_dimension_numbers<[1], [0], [0], [1], [0, 0, 1, 1], [], []>} : vector<8x32xf32>, vector<32x32xf32>, vector<8x32xf32> -> vector<8x32xf32>
    %cst_69 = arith.constant dense<0.000000e+00> : vector<8x32xf32>
    %135 = tpu.matmul %129, %29, %cst_69 {dimension_numbers = #tpu.dot_dimension_numbers<[1], [0], [0], [1], [0, 0, 1, 1], [], []>} : vector<8x32xf32>, vector<32x32xf32>, vector<8x32xf32> -> vector<8x32xf32>
    %cst_70 = arith.constant dense<0.000000e+00> : vector<8x32xf32>
    %136 = tpu.matmul %129, %31, %cst_70 {dimension_numbers = #tpu.dot_dimension_numbers<[1], [0], [0], [1], [0, 0, 1, 1], [], []>} : vector<8x32xf32>, vector<32x32xf32>, vector<8x32xf32> -> vector<8x32xf32>
    %137 = arith.index_cast %133 : i32 to index
    %c0_71 = arith.constant 0 : index
    %138 = vector.load %arg8[%137, %c0_71] : memref<64x32xf32, #tpu.memory_space<vmem>>, vector<8x32xf32>
    %139 = arith.addf %138, %134 : vector<8x32xf32>
    %140 = arith.negf %139 : vector<8x32xf32>
    %141 = math.exp %140 : vector<8x32xf32>
    %cst_72 = arith.constant 1.000000e+00 : f32
    %142 = vector.broadcast %cst_72 : f32 to vector<8x32xf32>
    %143 = arith.addf %142, %141 : vector<8x32xf32>
    %144 = arith.divf %142, %143 : vector<8x32xf32>
    %145 = arith.index_cast %133 : i32 to index
    %c0_73 = arith.constant 0 : index
    %146 = vector.load %arg9[%145, %c0_73] : memref<64x32xf32, #tpu.memory_space<vmem>>, vector<8x32xf32>
    %147 = arith.addf %146, %135 : vector<8x32xf32>
    %148 = arith.negf %147 : vector<8x32xf32>
    %149 = math.exp %148 : vector<8x32xf32>
    %cst_74 = arith.constant 1.000000e+00 : f32
    %150 = vector.broadcast %cst_74 : f32 to vector<8x32xf32>
    %151 = arith.addf %150, %149 : vector<8x32xf32>
    %152 = arith.divf %150, %151 : vector<8x32xf32>
    %153 = arith.index_cast %133 : i32 to index
    %c0_75 = arith.constant 0 : index
    %154 = vector.load %arg10[%153, %c0_75] : memref<64x32xf32, #tpu.memory_space<vmem>>, vector<8x32xf32>
    %155 = arith.addf %136, %34 : vector<8x32xf32>
    %156 = arith.mulf %144, %155 : vector<8x32xf32>
    %157 = arith.addf %154, %156 : vector<8x32xf32>
    %158 = math.tanh %157 : vector<8x32xf32>
    %159 = arith.subf %129, %158 : vector<8x32xf32>
    %160 = arith.mulf %152, %159 : vector<8x32xf32>
    %161 = arith.addf %158, %160 : vector<8x32xf32>
    %162 = arith.index_cast %133 : i32 to index
    %c0_76 = arith.constant 0 : index
    %163 = vector.load %arg11[%162, %c0_76] : memref<64x32xf32, #tpu.memory_space<vmem>>, vector<8x32xf32>
    tpu.vector_store %arg11[%162, %c0_76], %161 {strides = array<i32>} : memref<64x32xf32, #tpu.memory_space<vmem>>, vector<8x32xf32>,
    %c4_i32 = arith.constant 4 : i32
    %c8_i32_77 = arith.constant 8 : i32
    %164 = arith.muli %c4_i32, %c8_i32_77 : i32
    %165 = tpu.assume_multiple %164, 8 : i32
    %cst_78 = arith.constant dense<0.000000e+00> : vector<8x32xf32>
    %166 = tpu.matmul %161, %27, %cst_78 {dimension_numbers = #tpu.dot_dimension_numbers<[1], [0], [0], [1], [0, 0, 1, 1], [], []>} : vector<8x32xf32>, vector<32x32xf32>, vector<8x32xf32> -> vector<8x32xf32>
    %cst_79 = arith.constant dense<0.000000e+00> : vector<8x32xf32>
    %167 = tpu.matmul %161, %29, %cst_79 {dimension_numbers = #tpu.dot_dimension_numbers<[1], [0], [0], [1], [0, 0, 1, 1], [], []>} : vector<8x32xf32>, vector<32x32xf32>, vector<8x32xf32> -> vector<8x32xf32>
    %cst_80 = arith.constant dense<0.000000e+00> : vector<8x32xf32>
    %168 = tpu.matmul %161, %31, %cst_80 {dimension_numbers = #tpu.dot_dimension_numbers<[1], [0], [0], [1], [0, 0, 1, 1], [], []>} : vector<8x32xf32>, vector<32x32xf32>, vector<8x32xf32> -> vector<8x32xf32>
    %169 = arith.index_cast %165 : i32 to index
    %c0_81 = arith.constant 0 : index
    %170 = vector.load %arg8[%169, %c0_81] : memref<64x32xf32, #tpu.memory_space<vmem>>, vector<8x32xf32>
    %171 = arith.addf %170, %166 : vector<8x32xf32>
    %172 = arith.negf %171 : vector<8x32xf32>
    %173 = math.exp %172 : vector<8x32xf32>
    %cst_82 = arith.constant 1.000000e+00 : f32
    %174 = vector.broadcast %cst_82 : f32 to vector<8x32xf32>
    %175 = arith.addf %174, %173 : vector<8x32xf32>
    %176 = arith.divf %174, %175 : vector<8x32xf32>
    %177 = arith.index_cast %165 : i32 to index
    %c0_83 = arith.constant 0 : index
    %178 = vector.load %arg9[%177, %c0_83] : memref<64x32xf32, #tpu.memory_space<vmem>>, vector<8x32xf32>
    %179 = arith.addf %178, %167 : vector<8x32xf32>
    %180 = arith.negf %179 : vector<8x32xf32>
    %181 = math.exp %180 : vector<8x32xf32>
    %cst_84 = arith.constant 1.000000e+00 : f32
    %182 = vector.broadcast %cst_84 : f32 to vector<8x32xf32>
    %183 = arith.addf %182, %181 : vector<8x32xf32>
    %184 = arith.divf %182, %183 : vector<8x32xf32>
    %185 = arith.index_cast %165 : i32 to index
    %c0_85 = arith.constant 0 : index
    %186 = vector.load %arg10[%185, %c0_85] : memref<64x32xf32, #tpu.memory_space<vmem>>, vector<8x32xf32>
    %187 = arith.addf %168, %34 : vector<8x32xf32>
    %188 = arith.mulf %176, %187 : vector<8x32xf32>
    %189 = arith.addf %186, %188 : vector<8x32xf32>
    %190 = math.tanh %189 : vector<8x32xf32>
    %191 = arith.subf %161, %190 : vector<8x32xf32>
    %192 = arith.mulf %184, %191 : vector<8x32xf32>
    %193 = arith.addf %190, %192 : vector<8x32xf32>
    %194 = arith.index_cast %165 : i32 to index
    %c0_86 = arith.constant 0 : index
    %195 = vector.load %arg11[%194, %c0_86] : memref<64x32xf32, #tpu.memory_space<vmem>>, vector<8x32xf32>
    tpu.vector_store %arg11[%194, %c0_86], %193 {strides = array<i32>} : memref<64x32xf32, #tpu.memory_space<vmem>>, vector<8x32xf32>,
    %c5_i32 = arith.constant 5 : i32
    %c8_i32_87 = arith.constant 8 : i32
    %196 = arith.muli %c5_i32, %c8_i32_87 : i32
    %197 = tpu.assume_multiple %196, 8 : i32
    %cst_88 = arith.constant dense<0.000000e+00> : vector<8x32xf32>
    %198 = tpu.matmul %193, %27, %cst_88 {dimension_numbers = #tpu.dot_dimension_numbers<[1], [0], [0], [1], [0, 0, 1, 1], [], []>} : vector<8x32xf32>, vector<32x32xf32>, vector<8x32xf32> -> vector<8x32xf32>
    %cst_89 = arith.constant dense<0.000000e+00> : vector<8x32xf32>
    %199 = tpu.matmul %193, %29, %cst_89 {dimension_numbers = #tpu.dot_dimension_numbers<[1], [0], [0], [1], [0, 0, 1, 1], [], []>} : vector<8x32xf32>, vector<32x32xf32>, vector<8x32xf32> -> vector<8x32xf32>
    %cst_90 = arith.constant dense<0.000000e+00> : vector<8x32xf32>
    %200 = tpu.matmul %193, %31, %cst_90 {dimension_numbers = #tpu.dot_dimension_numbers<[1], [0], [0], [1], [0, 0, 1, 1], [], []>} : vector<8x32xf32>, vector<32x32xf32>, vector<8x32xf32> -> vector<8x32xf32>
    %201 = arith.index_cast %197 : i32 to index
    %c0_91 = arith.constant 0 : index
    %202 = vector.load %arg8[%201, %c0_91] : memref<64x32xf32, #tpu.memory_space<vmem>>, vector<8x32xf32>
    %203 = arith.addf %202, %198 : vector<8x32xf32>
    %204 = arith.negf %203 : vector<8x32xf32>
    %205 = math.exp %204 : vector<8x32xf32>
    %cst_92 = arith.constant 1.000000e+00 : f32
    %206 = vector.broadcast %cst_92 : f32 to vector<8x32xf32>
    %207 = arith.addf %206, %205 : vector<8x32xf32>
    %208 = arith.divf %206, %207 : vector<8x32xf32>
    %209 = arith.index_cast %197 : i32 to index
    %c0_93 = arith.constant 0 : index
    %210 = vector.load %arg9[%209, %c0_93] : memref<64x32xf32, #tpu.memory_space<vmem>>, vector<8x32xf32>
    %211 = arith.addf %210, %199 : vector<8x32xf32>
    %212 = arith.negf %211 : vector<8x32xf32>
    %213 = math.exp %212 : vector<8x32xf32>
    %cst_94 = arith.constant 1.000000e+00 : f32
    %214 = vector.broadcast %cst_94 : f32 to vector<8x32xf32>
    %215 = arith.addf %214, %213 : vector<8x32xf32>
    %216 = arith.divf %214, %215 : vector<8x32xf32>
    %217 = arith.index_cast %197 : i32 to index
    %c0_95 = arith.constant 0 : index
    %218 = vector.load %arg10[%217, %c0_95] : memref<64x32xf32, #tpu.memory_space<vmem>>, vector<8x32xf32>
    %219 = arith.addf %200, %34 : vector<8x32xf32>
    %220 = arith.mulf %208, %219 : vector<8x32xf32>
    %221 = arith.addf %218, %220 : vector<8x32xf32>
    %222 = math.tanh %221 : vector<8x32xf32>
    %223 = arith.subf %193, %222 : vector<8x32xf32>
    %224 = arith.mulf %216, %223 : vector<8x32xf32>
    %225 = arith.addf %222, %224 : vector<8x32xf32>
    %226 = arith.index_cast %197 : i32 to index
    %c0_96 = arith.constant 0 : index
    %227 = vector.load %arg11[%226, %c0_96] : memref<64x32xf32, #tpu.memory_space<vmem>>, vector<8x32xf32>
    tpu.vector_store %arg11[%226, %c0_96], %225 {strides = array<i32>} : memref<64x32xf32, #tpu.memory_space<vmem>>, vector<8x32xf32>,
    %c6_i32 = arith.constant 6 : i32
    %c8_i32_97 = arith.constant 8 : i32
    %228 = arith.muli %c6_i32, %c8_i32_97 : i32
    %229 = tpu.assume_multiple %228, 8 : i32
    %cst_98 = arith.constant dense<0.000000e+00> : vector<8x32xf32>
    %230 = tpu.matmul %225, %27, %cst_98 {dimension_numbers = #tpu.dot_dimension_numbers<[1], [0], [0], [1], [0, 0, 1, 1], [], []>} : vector<8x32xf32>, vector<32x32xf32>, vector<8x32xf32> -> vector<8x32xf32>
    %cst_99 = arith.constant dense<0.000000e+00> : vector<8x32xf32>
    %231 = tpu.matmul %225, %29, %cst_99 {dimension_numbers = #tpu.dot_dimension_numbers<[1], [0], [0], [1], [0, 0, 1, 1], [], []>} : vector<8x32xf32>, vector<32x32xf32>, vector<8x32xf32> -> vector<8x32xf32>
    %cst_100 = arith.constant dense<0.000000e+00> : vector<8x32xf32>
    %232 = tpu.matmul %225, %31, %cst_100 {dimension_numbers = #tpu.dot_dimension_numbers<[1], [0], [0], [1], [0, 0, 1, 1], [], []>} : vector<8x32xf32>, vector<32x32xf32>, vector<8x32xf32> -> vector<8x32xf32>
    %233 = arith.index_cast %229 : i32 to index
    %c0_101 = arith.constant 0 : index
    %234 = vector.load %arg8[%233, %c0_101] : memref<64x32xf32, #tpu.memory_space<vmem>>, vector<8x32xf32>
    %235 = arith.addf %234, %230 : vector<8x32xf32>
    %236 = arith.negf %235 : vector<8x32xf32>
    %237 = math.exp %236 : vector<8x32xf32>
    %cst_102 = arith.constant 1.000000e+00 : f32
    %238 = vector.broadcast %cst_102 : f32 to vector<8x32xf32>
    %239 = arith.addf %238, %237 : vector<8x32xf32>
    %240 = arith.divf %238, %239 : vector<8x32xf32>
    %241 = arith.index_cast %229 : i32 to index
    %c0_103 = arith.constant 0 : index
    %242 = vector.load %arg9[%241, %c0_103] : memref<64x32xf32, #tpu.memory_space<vmem>>, vector<8x32xf32>
    %243 = arith.addf %242, %231 : vector<8x32xf32>
    %244 = arith.negf %243 : vector<8x32xf32>
    %245 = math.exp %244 : vector<8x32xf32>
    %cst_104 = arith.constant 1.000000e+00 : f32
    %246 = vector.broadcast %cst_104 : f32 to vector<8x32xf32>
    %247 = arith.addf %246, %245 : vector<8x32xf32>
    %248 = arith.divf %246, %247 : vector<8x32xf32>
    %249 = arith.index_cast %229 : i32 to index
    %c0_105 = arith.constant 0 : index
    %250 = vector.load %arg10[%249, %c0_105] : memref<64x32xf32, #tpu.memory_space<vmem>>, vector<8x32xf32>
    %251 = arith.addf %232, %34 : vector<8x32xf32>
    %252 = arith.mulf %240, %251 : vector<8x32xf32>
    %253 = arith.addf %250, %252 : vector<8x32xf32>
    %254 = math.tanh %253 : vector<8x32xf32>
    %255 = arith.subf %225, %254 : vector<8x32xf32>
    %256 = arith.mulf %248, %255 : vector<8x32xf32>
    %257 = arith.addf %254, %256 : vector<8x32xf32>
    %258 = arith.index_cast %229 : i32 to index
    %c0_106 = arith.constant 0 : index
    %259 = vector.load %arg11[%258, %c0_106] : memref<64x32xf32, #tpu.memory_space<vmem>>, vector<8x32xf32>
    tpu.vector_store %arg11[%258, %c0_106], %257 {strides = array<i32>} : memref<64x32xf32, #tpu.memory_space<vmem>>, vector<8x32xf32>,
    %c7_i32 = arith.constant 7 : i32
    %c8_i32_107 = arith.constant 8 : i32
    %260 = arith.muli %c7_i32, %c8_i32_107 : i32
    %261 = tpu.assume_multiple %260, 8 : i32
    %cst_108 = arith.constant dense<0.000000e+00> : vector<8x32xf32>
    %262 = tpu.matmul %257, %27, %cst_108 {dimension_numbers = #tpu.dot_dimension_numbers<[1], [0], [0], [1], [0, 0, 1, 1], [], []>} : vector<8x32xf32>, vector<32x32xf32>, vector<8x32xf32> -> vector<8x32xf32>
    %cst_109 = arith.constant dense<0.000000e+00> : vector<8x32xf32>
    %263 = tpu.matmul %257, %29, %cst_109 {dimension_numbers = #tpu.dot_dimension_numbers<[1], [0], [0], [1], [0, 0, 1, 1], [], []>} : vector<8x32xf32>, vector<32x32xf32>, vector<8x32xf32> -> vector<8x32xf32>
    %cst_110 = arith.constant dense<0.000000e+00> : vector<8x32xf32>
    %264 = tpu.matmul %257, %31, %cst_110 {dimension_numbers = #tpu.dot_dimension_numbers<[1], [0], [0], [1], [0, 0, 1, 1], [], []>} : vector<8x32xf32>, vector<32x32xf32>, vector<8x32xf32> -> vector<8x32xf32>
    %265 = arith.index_cast %261 : i32 to index
    %c0_111 = arith.constant 0 : index
    %266 = vector.load %arg8[%265, %c0_111] : memref<64x32xf32, #tpu.memory_space<vmem>>, vector<8x32xf32>
    %267 = arith.addf %266, %262 : vector<8x32xf32>
    %268 = arith.negf %267 : vector<8x32xf32>
    %269 = math.exp %268 : vector<8x32xf32>
    %cst_112 = arith.constant 1.000000e+00 : f32
    %270 = vector.broadcast %cst_112 : f32 to vector<8x32xf32>
    %271 = arith.addf %270, %269 : vector<8x32xf32>
    %272 = arith.divf %270, %271 : vector<8x32xf32>
    %273 = arith.index_cast %261 : i32 to index
    %c0_113 = arith.constant 0 : index
    %274 = vector.load %arg9[%273, %c0_113] : memref<64x32xf32, #tpu.memory_space<vmem>>, vector<8x32xf32>
    %275 = arith.addf %274, %263 : vector<8x32xf32>
    %276 = arith.negf %275 : vector<8x32xf32>
    %277 = math.exp %276 : vector<8x32xf32>
    %cst_114 = arith.constant 1.000000e+00 : f32
    %278 = vector.broadcast %cst_114 : f32 to vector<8x32xf32>
    %279 = arith.addf %278, %277 : vector<8x32xf32>
    %280 = arith.divf %278, %279 : vector<8x32xf32>
    %281 = arith.index_cast %261 : i32 to index
    %c0_115 = arith.constant 0 : index
    %282 = vector.load %arg10[%281, %c0_115] : memref<64x32xf32, #tpu.memory_space<vmem>>, vector<8x32xf32>
    %283 = arith.addf %264, %34 : vector<8x32xf32>
    %284 = arith.mulf %272, %283 : vector<8x32xf32>
    %285 = arith.addf %282, %284 : vector<8x32xf32>
    %286 = math.tanh %285 : vector<8x32xf32>
    %287 = arith.subf %257, %286 : vector<8x32xf32>
    %288 = arith.mulf %280, %287 : vector<8x32xf32>
    %289 = arith.addf %286, %288 : vector<8x32xf32>
    %290 = arith.index_cast %261 : i32 to index
    %c0_116 = arith.constant 0 : index
    %291 = vector.load %arg11[%290, %c0_116] : memref<64x32xf32, #tpu.memory_space<vmem>>, vector<8x32xf32>
    tpu.vector_store %arg11[%290, %c0_116], %289 {strides = array<i32>} : memref<64x32xf32, #tpu.memory_space<vmem>>, vector<8x32xf32>,
    %c8_i32_117 = arith.constant 8 : i32
    %c0_118 = arith.constant 0 : index
    %c0_119 = arith.constant 0 : index
    %292 = vector.load %arg11[%c0_118, %c0_119] : memref<64x32xf32, #tpu.memory_space<vmem>>, vector<64x32xf32>
    %c0_120 = arith.constant 0 : index
    %c0_121 = arith.constant 0 : index
    %293 = vector.load %arg5[%c0_120, %c0_121] : memref<32x8xf32, #tpu.memory_space<vmem>>, vector<32x8xf32>
    %cst_122 = arith.constant dense<0.000000e+00> : vector<64x8xf32>
    %294 = tpu.matmul %292, %293, %cst_122 {dimension_numbers = #tpu.dot_dimension_numbers<[1], [0], [0], [1], [0, 0, 1, 1], [], []>} : vector<64x32xf32>, vector<32x8xf32>, vector<64x8xf32> -> vector<64x8xf32>
    %c0_123 = arith.constant 0 : index
    %c0_124 = arith.constant 0 : index
    %295 = vector.load %arg6[%c0_123, %c0_124] : memref<1x8xf32, #tpu.memory_space<vmem>>, vector<1x8xf32>
    %296 = vector.broadcast %295 : vector<1x8xf32> to vector<64x8xf32>
    %297 = arith.addf %294, %296 : vector<64x8xf32>
    %298 = vector.shape_cast %297 : vector<64x8xf32> to vector<8x8x8xf32>
    %c0_125 = arith.constant 0 : index
    %c0_126 = arith.constant 0 : index
    %c0_127 = arith.constant 0 : index
    %299 = vector.load %arg7[%c0_125, %c0_126, %c0_127] : memref<8x8x8xf32, #tpu.memory_space<vmem>>, vector<8x8x8xf32>
    tpu.vector_store %arg7[%c0_125, %c0_126, %c0_127], %298 {strides = array<i32>} : memref<8x8x8xf32, #tpu.memory_space<vmem>>, vector<8x8x8xf32>,
    return
  }
}

</mosaic_0001>

<llo_original>
// kernel: tpu_custom_call.1
$region0: #{tpu_custom_call.1}
  #allocation0 [shape = 'u32[]', space=smem, size = 0x4, offset = 0x4, fixed_abs, tag = 'smem constant byte address 0x4 - core index']
  #allocation1 [shape = 'u32[72,128]{1,0:T(1,128)}', space=vmem, size = 0x9000, scoped, tag = 'internal scratch']
  #allocation2 [shape = 'f32[64,32]{1,0:T(8,128)}', space=vmem, size = 0x8000, scoped, tag = 'scratch operand']
  #allocation3 [shape = 'f32[64,32]{1,0:T(8,128)}', space=vmem, size = 0x8000, scoped, tag = 'scratch operand']
  #allocation4 [shape = 'f32[64,32]{1,0:T(8,128)}', space=vmem, size = 0x8000, scoped, tag = 'scratch operand']
  #allocation5 [shape = 'f32[64,32]{1,0:T(8,128)}', space=vmem, size = 0x8000, scoped, tag = 'scratch operand']
  %s0 = inlined_call_operand.hbm [shape: f32[8,8,16], index: 0, kind: input, shape index: {}]
  %s1 = inlined_call_operand.hbm [shape: f32[3,16,32], index: 1, kind: input, shape index: {}]
  %s2 = inlined_call_operand.hbm [shape: f32[3,32,32], index: 2, kind: input, shape index: {}]
  %s3 = inlined_call_operand.vmem [shape: f32[3,1,32], index: 3, kind: input, shape index: {}]
  %s4 = inlined_call_operand.vmem [shape: f32[1,32], index: 4, kind: input, shape index: {}]
  %s5 = inlined_call_operand.vmem [shape: f32[32,8], index: 5, kind: input, shape index: {}]
  %s6 = inlined_call_operand.vmem [shape: f32[1,8], index: 6, kind: input, shape index: {}]
  %s7 = inlined_call_operand.hbm [shape: f32[8,8,8], index: 7, kind: output, shape index: {}]
  %s8 = sld [smem:[#allocation0]]
  $region50: #{tpu_custom_call.1} parent=0
    _
  %s10 = ssub.s32 1, %s8
  %s11 = scalar_select 0, %s10, %s8
  $region1: #{tpu_custom_call.1} parent=0
    #allocation6 [shape = 'u8[32768]{0}', space=vmem, size = 0x8000, scoped, tag = 'input window, operand 0, single buffered']
    #allocation7 [shape = 's32[1]{0}', space=sflag, size = 0x4, scoped, tag = 'scoped memory for tpu_custom_call.1']
    #allocation8 [shape = 's32[1]{0}', space=sflag, size = 0x4, scoped, tag = 'scoped memory for tpu_custom_call.1']
    #allocation9 [shape = 'u8[24576]{0}', space=vmem, size = 0x6000, scoped, tag = 'input window, operand 1, single buffered']
    #allocation10 [shape = 's32[1]{0}', space=sflag, size = 0x4, scoped, tag = 'scoped memory for tpu_custom_call.1']
    #allocation11 [shape = 'u8[49152]{0}', space=vmem, size = 0xc000, scoped, tag = 'input window, operand 2, single buffered']
    #allocation12 [shape = 'u8[32768]{0}', space=vmem, size = 0x8000, scoped, tag = 'output window, operand 0, single buffered']
    %12 = vsyncpa [#allocation7], 0
    %13 = vsyncpa [#allocation10], 0
    %14 = vsyncpa [#allocation8], 0
    // Predicated region
    $region2: #{tpu_custom_call.1} parent=1 // pred_check
      _
    $region3: #{tpu_custom_call.1} parent=1 // pred_check_branch
      %16 = sbr.rel (0) target = $region5
    $region4: #{tpu_custom_call.1} parent=1 // pred_region
      %18 = vsyncadd [#allocation7], 0
      %s19 = sshll.u32 %s0, 4
      %s20 = int_to_ptr.hbm [resolvable:$true] %s19
      %s21 = sshll.u32 [#allocation6], 4
      %s22 = int_to_ptr.vmem [resolvable:$true] %s21
      %27 = dma.hbm_to_vmem [thread:$0]  %s20, 1024, %s22, [#allocation7], 128, 128, 8
    $region5: #{tpu_custom_call.1} parent=1 // pred_fallthru
      _
    // Predicated region
    $region6: #{tpu_custom_call.1} parent=1 // pred_check
      _
    $region7: #{tpu_custom_call.1} parent=1 // pred_check_branch
      %29 = sbr.rel (0) target = $region9
    $region8: #{tpu_custom_call.1} parent=1 // pred_region
      %31 = vsyncadd [#allocation10], 0
      %s32 = sshll.u32 %s1, 4
      %s33 = int_to_ptr.hbm [resolvable:$true] %s32
      %s34 = sshll.u32 [#allocation9], 4
      %s35 = int_to_ptr.vmem [resolvable:$true] %s34
      %40 = dma.hbm_to_vmem [thread:$0]  %s33, 768, %s35, [#allocation10], 128, 128, 8
    $region9: #{tpu_custom_call.1} parent=1 // pred_fallthru
      _
    // Predicated region
    $region10: #{tpu_custom_call.1} parent=1 // pred_check
      _
    $region11: #{tpu_custom_call.1} parent=1 // pred_check_branch
      %42 = sbr.rel (0) target = $region13
    $region12: #{tpu_custom_call.1} parent=1 // pred_region
      %44 = vsyncadd [#allocation10], 0
      %s45 = sshll.u32 %s2, 4
      %s46 = int_to_ptr.hbm [resolvable:$true] %s45
      %s47 = sshll.u32 [#allocation11], 4
      %s48 = int_to_ptr.vmem [resolvable:$true] %s47
      %53 = dma.hbm_to_vmem [thread:$0]  %s46, 1536, %s48, [#allocation10], 128, 128, 8
    $region13: #{tpu_custom_call.1} parent=1 // pred_fallthru
      _
    // Predicated region
    $region14: #{tpu_custom_call.1} parent=1 // pred_check
      _
    $region15: #{tpu_custom_call.1} parent=1 // pred_check_branch
      %55 = sbr.rel (0) target = $region17
    $region16: #{tpu_custom_call.1} parent=1 // pred_region
      _
    $region17: #{tpu_custom_call.1} parent=1 // pred_fallthru
      _
    // Predicated region
    $region18: #{tpu_custom_call.1} parent=1 // pred_check
      _
    $region19: #{tpu_custom_call.1} parent=1 // pred_check_branch
      %57 = sbr.rel (0) target = $region21
    $region20: #{tpu_custom_call.1} parent=1 // pred_region
      _
    $region21: #{tpu_custom_call.1} parent=1 // pred_fallthru
      _
    // Predicated region
    $region22: #{tpu_custom_call.1} parent=1 // pred_check
      _
    $region23: #{tpu_custom_call.1} parent=1 // pred_check_branch
      %59 = sbr.rel (0) target = $region25
    $region24: #{tpu_custom_call.1} parent=1 // pred_region
      _
    $region25: #{tpu_custom_call.1} parent=1 // pred_fallthru
      _
    // Predicated region
    $region26: #{tpu_custom_call.1} parent=1 // pred_check
      _
    $region27: #{tpu_custom_call.1} parent=1 // pred_check_branch
      %61 = sbr.rel (0) target = $region29
    $region28: #{tpu_custom_call.1} parent=1 // pred_region
      _
    $region29: #{tpu_custom_call.1} parent=1 // pred_fallthru
      _
    // Predicated region
    $region30: #{tpu_custom_call.1} parent=1 // pred_check
      _
    $region31: #{tpu_custom_call.1} parent=1 // pred_check_branch
      %63 = sbr.rel (0) target = $region33
    $region32: #{tpu_custom_call.1} parent=1 // pred_region
      %65 = dma.done [#allocation7], 1024
    $region33: #{tpu_custom_call.1} parent=1 // pred_fallthru
      _
    // Predicated region
    $region34: #{tpu_custom_call.1} parent=1 // pred_check
      _
    $region35: #{tpu_custom_call.1} parent=1 // pred_check_branch
      %67 = sbr.rel (0) target = $region37
    $region36: #{tpu_custom_call.1} parent=1 // pred_region
      %69 = dma.done [#allocation10], 768
    $region37: #{tpu_custom_call.1} parent=1 // pred_fallthru
      _
    // Predicated region
    $region38: #{tpu_custom_call.1} parent=1 // pred_check
      _
    $region39: #{tpu_custom_call.1} parent=1 // pred_check_branch
      %71 = sbr.rel (0) target = $region41
    $region40: #{tpu_custom_call.1} parent=1 // pred_region
      %73 = dma.done [#allocation10], 1536
    $region41: #{tpu_custom_call.1} parent=1 // pred_fallthru
      _
    %v74 = vld [vmem:[#allocation6] sm:$0xff]
    %v75 = vld [vmem:[#allocation6 + $0x8] sm:$0xff]
    %v76 = vld [vmem:[#allocation6 + $0x10] sm:$0xff]
    %v77 = vld [vmem:[#allocation6 + $0x18] sm:$0xff]
    %v78 = vld [vmem:[#allocation6 + $0x20] sm:$0xff]
    %v79 = vld [vmem:[#allocation6 + $0x28] sm:$0xff]
    %v80 = vld [vmem:[#allocation6 + $0x30] sm:$0xff]
    %v81 = vld [vmem:[#allocation6 + $0x38] sm:$0xff]
    %v82 = vld [vmem:[#allocation9] sm:$0xff]
    %v83 = vld [vmem:[#allocation9 + $0x8] sm:$0xff]
    %v84 = vld [vmem:[%s3] sm:$0x1]
    %v86 = vperm.slane %v84, 0
    %vm88 = vcmask 130048
    %v90 = vsel %vm88, %v74, 0
    %v93 = vsel %vm88, %v75, 0
    %v96 = vsel %vm88, %v76, 0
    %v99 = vsel %vm88, %v77, 0
    %v102 = vsel %vm88, %v78, 0
    %v105 = vsel %vm88, %v79, 0
    %v108 = vsel %vm88, %v80, 0
    %v111 = vsel %vm88, %v81, 0
    %113 = vmatpush.msra.mxu0 0.0
    %114 = vmatpush.msra.mxu0 0.0
    %115 = vmatpush.msra.mxu0 0.0
    %116 = vmatpush.msra.mxu0 0.0
    %117 = vmatpush.msra.mxu0 0.0
    %118 = vmatpush.msra.mxu0 0.0
    %119 = vmatpush.msra.mxu0 0.0
    %120 = vmatpush.msra.mxu0 0.0
    %121 = vmatpush.msra.mxu0 0.0
    %122 = vmatpush.msra.mxu0 0.0
    %123 = vmatpush.msra.mxu0 0.0
    %124 = vmatpush.msra.mxu0 0.0
    %125 = vmatpush.msra.mxu0 0.0
    %126 = vmatpush.msra.mxu0 0.0
    %127 = vmatpush.msra.mxu0 %v83
    %128 = vmatpush.msra.mxu0 %v82
    %129 = vmatmul.f32.gmra.mxu0 %v90
    %v130 = vpop.f32.mrf.mxu0
    %v131 = vadd.f32 %v86, %v130
    %132 = vmatmul.f32.gmra.mxu0 %v93
    %v133 = vpop.f32.mrf.mxu0
    %v134 = vadd.f32 %v86, %v133
    %135 = vmatmul.f32.gmra.mxu0 %v96
    %v136 = vpop.f32.mrf.mxu0
    %v137 = vadd.f32 %v86, %v136
    %138 = vmatmul.f32.gmra.mxu0 %v99
    %v139 = vpop.f32.mrf.mxu0
    %v140 = vadd.f32 %v86, %v139
    %141 = vmatmul.f32.gmra.mxu0 %v102
    %v142 = vpop.f32.mrf.mxu0
    %v143 = vadd.f32 %v86, %v142
    %144 = vmatmul.f32.gmra.mxu0 %v105
    %v145 = vpop.f32.mrf.mxu0
    %v146 = vadd.f32 %v86, %v145
    %147 = vmatmul.f32.gmra.mxu0 %v108
    %v148 = vpop.f32.mrf.mxu0
    %v149 = vadd.f32 %v86, %v148
    %150 = vmatmul.f32.gmra.mxu0 %v111
    %v151 = vpop.f32.mrf.mxu0
    %v152 = vadd.f32 %v86, %v151
    %153 = vdwg.mxu0
    %vm154 = vcmask 261120
    %155 = vst.msk [vmem:[#allocation2] sm:$0xff] %vm154, %v131
    %156 = vst.msk [vmem:[#allocation2 + $0x8] sm:$0xff] %vm154, %v134
    %157 = vst.msk [vmem:[#allocation2 + $0x10] sm:$0xff] %vm154, %v137
    %158 = vst.msk [vmem:[#allocation2 + $0x18] sm:$0xff] %vm154, %v140
    %159 = vst.msk [vmem:[#allocation2 + $0x20] sm:$0xff] %vm154, %v143
    %160 = vst.msk [vmem:[#allocation2 + $0x28] sm:$0xff] %vm154, %v146
    %161 = vst.msk [vmem:[#allocation2 + $0x30] sm:$0xff] %vm154, %v149
    %162 = vst.msk [vmem:[#allocation2 + $0x38] sm:$0xff] %vm154, %v152
    %s163 = scalar_lea.vmem [#allocation9], 16
    %v164 = vld [vmem:[%s163] sm:$0xff]
    %v165 = vld [vmem:[%s163 + $0x8] sm:$0xff]
    %s166 = scalar_lea.vmem %s3, 1
    %v167 = vld [vmem:[%s166] sm:$0x1]
    %v169 = vperm.slane %v167, 0
    %171 = vmatpush.msra.mxu0 0.0
    %172 = vmatpush.msra.mxu0 0.0
    %173 = vmatpush.msra.mxu0 0.0
    %174 = vmatpush.msra.mxu0 0.0
    %175 = vmatpush.msra.mxu0 0.0
    %176 = vmatpush.msra.mxu0 0.0
    %177 = vmatpush.msra.mxu0 0.0
    %178 = vmatpush.msra.mxu0 0.0
    %179 = vmatpush.msra.mxu0 0.0
    %180 = vmatpush.msra.mxu0 0.0
    %181 = vmatpush.msra.mxu0 0.0
    %182 = vmatpush.msra.mxu0 0.0
    %183 = vmatpush.msra.mxu0 0.0
    %184 = vmatpush.msra.mxu0 0.0
    %185 = vmatpush.msra.mxu0 %v165
    %186 = vmatpush.msra.mxu0 %v164
    %187 = vmatmul.f32.gmra.mxu0 %v90
    %v188 = vpop.f32.mrf.mxu0
    %v189 = vadd.f32 %v169, %v188
    %190 = vmatmul.f32.gmra.mxu0 %v93
    %v191 = vpop.f32.mrf.mxu0
    %v192 = vadd.f32 %v169, %v191
    %193 = vmatmul.f32.gmra.mxu0 %v96
    %v194 = vpop.f32.mrf.mxu0
    %v195 = vadd.f32 %v169, %v194
    %196 = vmatmul.f32.gmra.mxu0 %v99
    %v197 = vpop.f32.mrf.mxu0
    %v198 = vadd.f32 %v169, %v197
    %199 = vmatmul.f32.gmra.mxu0 %v102
    %v200 = vpop.f32.mrf.mxu0
    %v201 = vadd.f32 %v169, %v200
    %202 = vmatmul.f32.gmra.mxu0 %v105
    %v203 = vpop.f32.mrf.mxu0
    %v204 = vadd.f32 %v169, %v203
    %205 = vmatmul.f32.gmra.mxu0 %v108
    %v206 = vpop.f32.mrf.mxu0
    %v207 = vadd.f32 %v169, %v206
    %208 = vmatmul.f32.gmra.mxu0 %v111
    %v209 = vpop.f32.mrf.mxu0
    %v210 = vadd.f32 %v169, %v209
    %211 = vdwg.mxu0
    %212 = vst.msk [vmem:[#allocation3] sm:$0xff] %vm154, %v189
    %213 = vst.msk [vmem:[#allocation3 + $0x8] sm:$0xff] %vm154, %v192
    %214 = vst.msk [vmem:[#allocation3 + $0x10] sm:$0xff] %vm154, %v195
    %215 = vst.msk [vmem:[#allocation3 + $0x18] sm:$0xff] %vm154, %v198
    %216 = vst.msk [vmem:[#allocation3 + $0x20] sm:$0xff] %vm154, %v201
    %217 = vst.msk [vmem:[#allocation3 + $0x28] sm:$0xff] %vm154, %v204
    %218 = vst.msk [vmem:[#allocation3 + $0x30] sm:$0xff] %vm154, %v207
    %219 = vst.msk [vmem:[#allocation3 + $0x38] sm:$0xff] %vm154, %v210
    %s220 = scalar_lea.vmem [#allocation9], 32
    %v221 = vld [vmem:[%s220] sm:$0xff]
    %v222 = vld [vmem:[%s220 + $0x8] sm:$0xff]
    %s223 = scalar_lea.vmem %s3, 2
    %v224 = vld [vmem:[%s223] sm:$0x1]
    %v226 = vperm.slane %v224, 0
    %228 = vmatpush.msra.mxu0 0.0
    %229 = vmatpush.msra.mxu0 0.0
    %230 = vmatpush.msra.mxu0 0.0
    %231 = vmatpush.msra.mxu0 0.0
    %232 = vmatpush.msra.mxu0 0.0
    %233 = vmatpush.msra.mxu0 0.0
    %234 = vmatpush.msra.mxu0 0.0
    %235 = vmatpush.msra.mxu0 0.0
    %236 = vmatpush.msra.mxu0 0.0
    %237 = vmatpush.msra.mxu0 0.0
    %238 = vmatpush.msra.mxu0 0.0
    %239 = vmatpush.msra.mxu0 0.0
    %240 = vmatpush.msra.mxu0 0.0
    %241 = vmatpush.msra.mxu0 0.0
    %242 = vmatpush.msra.mxu0 %v222
    %243 = vmatpush.msra.mxu0 %v221
    %244 = vmatmul.f32.gmra.mxu0 %v90
    %v245 = vpop.f32.mrf.mxu0
    %v246 = vadd.f32 %v226, %v245
    %247 = vmatmul.f32.gmra.mxu0 %v93
    %v248 = vpop.f32.mrf.mxu0
    %v249 = vadd.f32 %v226, %v248
    %250 = vmatmul.f32.gmra.mxu0 %v96
    %v251 = vpop.f32.mrf.mxu0
    %v252 = vadd.f32 %v226, %v251
    %253 = vmatmul.f32.gmra.mxu0 %v99
    %v254 = vpop.f32.mrf.mxu0
    %v255 = vadd.f32 %v226, %v254
    %256 = vmatmul.f32.gmra.mxu0 %v102
    %v257 = vpop.f32.mrf.mxu0
    %v258 = vadd.f32 %v226, %v257
    %259 = vmatmul.f32.gmra.mxu0 %v105
    %v260 = vpop.f32.mrf.mxu0
    %v261 = vadd.f32 %v226, %v260
    %262 = vmatmul.f32.gmra.mxu0 %v108
    %v263 = vpop.f32.mrf.mxu0
    %v264 = vadd.f32 %v226, %v263
    %265 = vmatmul.f32.gmra.mxu0 %v111
    %v266 = vpop.f32.mrf.mxu0
    %v267 = vadd.f32 %v226, %v266
    %268 = vdwg.mxu0
    %269 = vst.msk [vmem:[#allocation4] sm:$0xff] %vm154, %v246
    %270 = vst.msk [vmem:[#allocation4 + $0x8] sm:$0xff] %vm154, %v249
    %271 = vst.msk [vmem:[#allocation4 + $0x10] sm:$0xff] %vm154, %v252
    %272 = vst.msk [vmem:[#allocation4 + $0x18] sm:$0xff] %vm154, %v255
    %273 = vst.msk [vmem:[#allocation4 + $0x20] sm:$0xff] %vm154, %v258
    %274 = vst.msk [vmem:[#allocation4 + $0x28] sm:$0xff] %vm154, %v261
    %275 = vst.msk [vmem:[#allocation4 + $0x30] sm:$0xff] %vm154, %v264
    %276 = vst.msk [vmem:[#allocation4 + $0x38] sm:$0xff] %vm154, %v267
    %v277 = vld [vmem:[#allocation11] sm:$0xff]
    %v278 = vld [vmem:[#allocation11 + $0x8] sm:$0xff]
    %v279 = vld [vmem:[#allocation11 + $0x10] sm:$0xff]
    %v280 = vld [vmem:[#allocation11 + $0x18] sm:$0xff]
    %s281 = scalar_lea.vmem [#allocation11], 32
    %v282 = vld [vmem:[%s281] sm:$0xff]
    %v283 = vld [vmem:[%s281 + $0x8] sm:$0xff]
    %v284 = vld [vmem:[%s281 + $0x10] sm:$0xff]
    %v285 = vld [vmem:[%s281 + $0x18] sm:$0xff]
    %s286 = scalar_lea.vmem [#allocation11], 64
    %v287 = vld [vmem:[%s286] sm:$0xff]
    %v288 = vld [vmem:[%s286 + $0x8] sm:$0xff]
    %v289 = vld [vmem:[%s286 + $0x10] sm:$0xff]
    %v290 = vld [vmem:[%s286 + $0x18] sm:$0xff]
    %v291 = vld [vmem:[%s4] sm:$0x1]
    %v293 = vperm.slane %v291, 0
    %v296 = vsel %vm154, 0.0, 0
    %298 = vmatpush.msra.mxu0 0.0
    %299 = vmatpush.msra.mxu0 0.0
    %300 = vmatpush.msra.mxu0 0.0
    %301 = vmatpush.msra.mxu0 0.0
    %302 = vmatpush.msra.mxu0 0.0
    %303 = vmatpush.msra.mxu0 0.0
    %304 = vmatpush.msra.mxu0 0.0
    %305 = vmatpush.msra.mxu0 0.0
    %306 = vmatpush.msra.mxu0 0.0
    %307 = vmatpush.msra.mxu0 0.0
    %308 = vmatpush.msra.mxu0 0.0
    %309 = vmatpush.msra.mxu0 0.0
    %310 = vmatpush.msra.mxu0 %v280
    %311 = vmatpush.msra.mxu0 %v279
    %312 = vmatpush.msra.mxu0 %v278
    %313 = vmatpush.msra.mxu0 %v277
    %314 = vmatmul.f32.gmra.mxu0 %v296
    %v315 = vpop.f32.mrf.mxu0
    %v316 = vadd.f32 0.0, %v315
    %317 = vdwg.mxu0
    %318 = vmatpush.msra.mxu0 0.0
    %319 = vmatpush.msra.mxu0 0.0
    %320 = vmatpush.msra.mxu0 0.0
    %321 = vmatpush.msra.mxu0 0.0
    %322 = vmatpush.msra.mxu0 0.0
    %323 = vmatpush.msra.mxu0 0.0
    %324 = vmatpush.msra.mxu0 0.0
    %325 = vmatpush.msra.mxu0 0.0
    %326 = vmatpush.msra.mxu0 0.0
    %327 = vmatpush.msra.mxu0 0.0
    %328 = vmatpush.msra.mxu0 0.0
    %329 = vmatpush.msra.mxu0 0.0
    %330 = vmatpush.msra.mxu0 %v285
    %331 = vmatpush.msra.mxu0 %v284
    %332 = vmatpush.msra.mxu0 %v283
    %333 = vmatpush.msra.mxu0 %v282
    %334 = vmatmul.f32.gmra.mxu0 %v296
    %v335 = vpop.f32.mrf.mxu0
    %v336 = vadd.f32 0.0, %v335
    %337 = vdwg.mxu0
    %v338 = vld [vmem:[#allocation2] sm:$0xff]
    %v339 = vadd.f32 %v338, %v316
    %v340 = vxor.u32 %v339, 2147483648
    %v341 = vmul.f32 %v340, 1.442695
    %v342 = vpow.pop %v341
    %v343 = vadd.f32 %v342, 1.0
    %v344 = vrcp.pop %v343
    %v345 = vmul.f32 %v343, %v344
    %v346 = vsub.f32 1.0, %v345
    %v347 = vmul.f32 %v344, %v346
    %v348 = vadd.f32 %v344, %v347
    %vm349 = vweird.f32 %v343
    %vm350 = vweird.f32 %v344
    %vm351 = vmor %vm349, %vm350
    %v352 = vsel %vm351, %v344, %v348
    %v353 = vand.u32 2147483647, %v343
    %vm354 = vcmp.eq.f32.partialorder %v353, 8.507059e+37
    %v355 = vand.u32 %v343, 2147483648
    %v356 = vor.u32 1.1754944e-38, %v355
    %v357 = vsel %vm354, %v356, %v352
    %v358 = vmul.f32 1.0, %v357
    %v359 = vld [vmem:[#allocation3] sm:$0xff]
    %v360 = vadd.f32 %v359, %v336
    %v361 = vxor.u32 %v360, 2147483648
    %v362 = vmul.f32 %v361, 1.442695
    %v363 = vpow.pop %v362
    %v364 = vadd.f32 %v363, 1.0
    %v365 = vrcp.pop %v364
    %v366 = vmul.f32 %v364, %v365
    %v367 = vsub.f32 1.0, %v366
    %v368 = vmul.f32 %v365, %v367
    %v369 = vadd.f32 %v365, %v368
    %vm370 = vweird.f32 %v364
    %vm371 = vweird.f32 %v365
    %vm372 = vmor %vm370, %vm371
    %v373 = vsel %vm372, %v365, %v369
    %v374 = vand.u32 2147483647, %v364
    %vm375 = vcmp.eq.f32.partialorder %v374, 8.507059e+37
    %v376 = vand.u32 %v364, 2147483648
    %v377 = vor.u32 1.1754944e-38, %v376
    %v378 = vsel %vm375, %v377, %v373
    %v379 = vmul.f32 1.0, %v378
    %v380 = vld [vmem:[#allocation4] sm:$0xff]
    %381 = vmatpush.msra.mxu0 0.0
    %382 = vmatpush.msra.mxu0 0.0
    %383 = vmatpush.msra.mxu0 0.0
    %384 = vmatpush.msra.mxu0 0.0
    %385 = vmatpush.msra.mxu0 0.0
    %386 = vmatpush.msra.mxu0 0.0
    %387 = vmatpush.msra.mxu0 0.0
    %388 = vmatpush.msra.mxu0 0.0
    %389 = vmatpush.msra.mxu0 0.0
    %390 = vmatpush.msra.mxu0 0.0
    %391 = vmatpush.msra.mxu0 0.0
    %392 = vmatpush.msra.mxu0 0.0
    %393 = vmatpush.msra.mxu0 %v290
    %394 = vmatpush.msra.mxu0 %v289
    %395 = vmatpush.msra.mxu0 %v288
    %396 = vmatpush.msra.mxu0 %v287
    %397 = vmatmul.f32.gmra.mxu0 %v296
    %v398 = vpop.f32.mrf.mxu0
    %v399 = vadd.f32 %v293, %v398
    %400 = vdwg.mxu0
    %v401 = vmul.f32 %v358, %v399
    %v402 = vadd.f32 %v380, %v401
    %v403 = vtanh.pop %v402
    %v404 = vsub.f32 0.0, %v403
    %v405 = vmul.f32 %v379, %v404
    %v406 = vadd.f32 %v403, %v405
    %407 = vst.msk [vmem:[#allocation5] sm:$0xff] %vm154, %v406
    %v409 = vsel %vm154, %v406, 0
    %411 = vmatpush.msra.mxu0 0.0
    %412 = vmatpush.msra.mxu0 0.0
    %413 = vmatpush.msra.mxu0 0.0
    %414 = vmatpush.msra.mxu0 0.0
    %415 = vmatpush.msra.mxu0 0.0
    %416 = vmatpush.msra.mxu0 0.0
    %417 = vmatpush.msra.mxu0 0.0
    %418 = vmatpush.msra.mxu0 0.0
    %419 = vmatpush.msra.mxu0 0.0
    %420 = vmatpush.msra.mxu0 0.0
    %421 = vmatpush.msra.mxu0 0.0
    %422 = vmatpush.msra.mxu0 0.0
    %423 = vmatpush.msra.mxu0 %v280
    %424 = vmatpush.msra.mxu0 %v279
    %425 = vmatpush.msra.mxu0 %v278
    %426 = vmatpush.msra.mxu0 %v277
    %427 = vmatmul.f32.gmra.mxu0 %v409
    %v428 = vpop.f32.mrf.mxu0
    %v429 = vadd.f32 0.0, %v428
    %430 = vdwg.mxu0
    %431 = vmatpush.msra.mxu0 0.0
    %432 = vmatpush.msra.mxu0 0.0
    %433 = vmatpush.msra.mxu0 0.0
    %434 = vmatpush.msra.mxu0 0.0
    %435 = vmatpush.msra.mxu0 0.0
    %436 = vmatpush.msra.mxu0 0.0
    %437 = vmatpush.msra.mxu0 0.0
    %438 = vmatpush.msra.mxu0 0.0
    %439 = vmatpush.msra.mxu0 0.0
    %440 = vmatpush.msra.mxu0 0.0
    %441 = vmatpush.msra.mxu0 0.0
    %442 = vmatpush.msra.mxu0 0.0
    %443 = vmatpush.msra.mxu0 %v285
    %444 = vmatpush.msra.mxu0 %v284
    %445 = vmatpush.msra.mxu0 %v283
    %446 = vmatpush.msra.mxu0 %v282
    %447 = vmatmul.f32.gmra.mxu0 %v409
    %v448 = vpop.f32.mrf.mxu0
    %v449 = vadd.f32 0.0, %v448
    %450 = vdwg.mxu0
    %s451 = scalar_lea.vmem [#allocation2], 8
    %v452 = vld [vmem:[%s451] sm:$0xff]
    %v453 = vadd.f32 %v452, %v429
    %v454 = vxor.u32 %v453, 2147483648
    %v455 = vmul.f32 %v454, 1.442695
    %v456 = vpow.pop %v455
    %v457 = vadd.f32 %v456, 1.0
    %v458 = vrcp.pop %v457
    %v459 = vmul.f32 %v457, %v458
    %v460 = vsub.f32 1.0, %v459
    %v461 = vmul.f32 %v458, %v460
    %v462 = vadd.f32 %v458, %v461
    %vm463 = vweird.f32 %v457
    %vm464 = vweird.f32 %v458
    %vm465 = vmor %vm463, %vm464
    %v466 = vsel %vm465, %v458, %v462
    %v467 = vand.u32 2147483647, %v457
    %vm468 = vcmp.eq.f32.partialorder %v467, 8.507059e+37
    %v469 = vand.u32 %v457, 2147483648
    %v470 = vor.u32 1.1754944e-38, %v469
    %v471 = vsel %vm468, %v470, %v466
    %v472 = vmul.f32 1.0, %v471
    %s473 = scalar_lea.vmem [#allocation3], 8
    %v474 = vld [vmem:[%s473] sm:$0xff]
    %v475 = vadd.f32 %v474, %v449
    %v476 = vxor.u32 %v475, 2147483648
    %v477 = vmul.f32 %v476, 1.442695
    %v478 = vpow.pop %v477
    %v479 = vadd.f32 %v478, 1.0
    %v480 = vrcp.pop %v479
    %v481 = vmul.f32 %v479, %v480
    %v482 = vsub.f32 1.0, %v481
    %v483 = vmul.f32 %v480, %v482
    %v484 = vadd.f32 %v480, %v483
    %vm485 = vweird.f32 %v479
    %vm486 = vweird.f32 %v480
    %vm487 = vmor %vm485, %vm486
    %v488 = vsel %vm487, %v480, %v484
    %v489 = vand.u32 2147483647, %v479
    %vm490 = vcmp.eq.f32.partialorder %v489, 8.507059e+37
    %v491 = vand.u32 %v479, 2147483648
    %v492 = vor.u32 1.1754944e-38, %v491
    %v493 = vsel %vm490, %v492, %v488
    %v494 = vmul.f32 1.0, %v493
    %s495 = scalar_lea.vmem [#allocation4], 8
    %v496 = vld [vmem:[%s495] sm:$0xff]
    %497 = vmatpush.msra.mxu0 0.0
    %498 = vmatpush.msra.mxu0 0.0
    %499 = vmatpush.msra.mxu0 0.0
    %500 = vmatpush.msra.mxu0 0.0
    %501 = vmatpush.msra.mxu0 0.0
    %502 = vmatpush.msra.mxu0 0.0
    %503 = vmatpush.msra.mxu0 0.0
    %504 = vmatpush.msra.mxu0 0.0
    %505 = vmatpush.msra.mxu0 0.0
    %506 = vmatpush.msra.mxu0 0.0
    %507 = vmatpush.msra.mxu0 0.0
    %508 = vmatpush.msra.mxu0 0.0
    %509 = vmatpush.msra.mxu0 %v290
    %510 = vmatpush.msra.mxu0 %v289
    %511 = vmatpush.msra.mxu0 %v288
    %512 = vmatpush.msra.mxu0 %v287
    %513 = vmatmul.f32.gmra.mxu0 %v409
    %v514 = vpop.f32.mrf.mxu0
    %v515 = vadd.f32 %v293, %v514
    %516 = vdwg.mxu0
    %v517 = vmul.f32 %v472, %v515
    %v518 = vadd.f32 %v496, %v517
    %v519 = vtanh.pop %v518
    %v520 = vsub.f32 %v406, %v519
    %v521 = vmul.f32 %v494, %v520
    %v522 = vadd.f32 %v519, %v521
    %s523 = scalar_lea.vmem [#allocation5], 8
    %524 = vst.msk [vmem:[%s523] sm:$0xff] %vm154, %v522
    %v526 = vsel %vm154, %v522, 0
    %528 = vmatpush.msra.mxu0 0.0
    %529 = vmatpush.msra.mxu0 0.0
    %530 = vmatpush.msra.mxu0 0.0
    %531 = vmatpush.msra.mxu0 0.0
    %532 = vmatpush.msra.mxu0 0.0
    %533 = vmatpush.msra.mxu0 0.0
    %534 = vmatpush.msra.mxu0 0.0
    %535 = vmatpush.msra.mxu0 0.0
    %536 = vmatpush.msra.mxu0 0.0
    %537 = vmatpush.msra.mxu0 0.0
    %538 = vmatpush.msra.mxu0 0.0
    %539 = vmatpush.msra.mxu0 0.0
    %540 = vmatpush.msra.mxu0 %v280
    %541 = vmatpush.msra.mxu0 %v279
    %542 = vmatpush.msra.mxu0 %v278
    %543 = vmatpush.msra.mxu0 %v277
    %544 = vmatmul.f32.gmra.mxu0 %v526
    %v545 = vpop.f32.mrf.mxu0
    %v546 = vadd.f32 0.0, %v545
    %547 = vdwg.mxu0
    %548 = vmatpush.msra.mxu0 0.0
    %549 = vmatpush.msra.mxu0 0.0
    %550 = vmatpush.msra.mxu0 0.0
    %551 = vmatpush.msra.mxu0 0.0
    %552 = vmatpush.msra.mxu0 0.0
    %553 = vmatpush.msra.mxu0 0.0
    %554 = vmatpush.msra.mxu0 0.0
    %555 = vmatpush.msra.mxu0 0.0
    %556 = vmatpush.msra.mxu0 0.0
    %557 = vmatpush.msra.mxu0 0.0
    %558 = vmatpush.msra.mxu0 0.0
    %559 = vmatpush.msra.mxu0 0.0
    %560 = vmatpush.msra.mxu0 %v285
    %561 = vmatpush.msra.mxu0 %v284
    %562 = vmatpush.msra.mxu0 %v283
    %563 = vmatpush.msra.mxu0 %v282
    %564 = vmatmul.f32.gmra.mxu0 %v526
    %v565 = vpop.f32.mrf.mxu0
    %v566 = vadd.f32 0.0, %v565
    %567 = vdwg.mxu0
    %s568 = scalar_lea.vmem [#allocation2], 16
    %v569 = vld [vmem:[%s568] sm:$0xff]
    %v570 = vadd.f32 %v569, %v546
    %v571 = vxor.u32 %v570, 2147483648
    %v572 = vmul.f32 %v571, 1.442695
    %v573 = vpow.pop %v572
    %v574 = vadd.f32 %v573, 1.0
    %v575 = vrcp.pop %v574
    %v576 = vmul.f32 %v574, %v575
    %v577 = vsub.f32 1.0, %v576
    %v578 = vmul.f32 %v575, %v577
    %v579 = vadd.f32 %v575, %v578
    %vm580 = vweird.f32 %v574
    %vm581 = vweird.f32 %v575
    %vm582 = vmor %vm580, %vm581
    %v583 = vsel %vm582, %v575, %v579
    %v584 = vand.u32 2147483647, %v574
    %vm585 = vcmp.eq.f32.partialorder %v584, 8.507059e+37
    %v586 = vand.u32 %v574, 2147483648
    %v587 = vor.u32 1.1754944e-38, %v586
    %v588 = vsel %vm585, %v587, %v583
    %v589 = vmul.f32 1.0, %v588
    %s590 = scalar_lea.vmem [#allocation3], 16
    %v591 = vld [vmem:[%s590] sm:$0xff]
    %v592 = vadd.f32 %v591, %v566
    %v593 = vxor.u32 %v592, 2147483648
    %v594 = vmul.f32 %v593, 1.442695
    %v595 = vpow.pop %v594
    %v596 = vadd.f32 %v595, 1.0
    %v597 = vrcp.pop %v596
    %v598 = vmul.f32 %v596, %v597
    %v599 = vsub.f32 1.0, %v598
    %v600 = vmul.f32 %v597, %v599
    %v601 = vadd.f32 %v597, %v600
    %vm602 = vweird.f32 %v596
    %vm603 = vweird.f32 %v597
    %vm604 = vmor %vm602, %vm603
    %v605 = vsel %vm604, %v597, %v601
    %v606 = vand.u32 2147483647, %v596
    %vm607 = vcmp.eq.f32.partialorder %v606, 8.507059e+37
    %v608 = vand.u32 %v596, 2147483648
    %v609 = vor.u32 1.1754944e-38, %v608
    %v610 = vsel %vm607, %v609, %v605
    %v611 = vmul.f32 1.0, %v610
    %s612 = scalar_lea.vmem [#allocation4], 16
    %v613 = vld [vmem:[%s612] sm:$0xff]
    %614 = vmatpush.msra.mxu0 0.0
    %615 = vmatpush.msra.mxu0 0.0
    %616 = vmatpush.msra.mxu0 0.0
    %617 = vmatpush.msra.mxu0 0.0
    %618 = vmatpush.msra.mxu0 0.0
    %619 = vmatpush.msra.mxu0 0.0
    %620 = vmatpush.msra.mxu0 0.0
    %621 = vmatpush.msra.mxu0 0.0
    %622 = vmatpush.msra.mxu0 0.0
    %623 = vmatpush.msra.mxu0 0.0
    %624 = vmatpush.msra.mxu0 0.0
    %625 = vmatpush.msra.mxu0 0.0
    %626 = vmatpush.msra.mxu0 %v290
    %627 = vmatpush.msra.mxu0 %v289
    %628 = vmatpush.msra.mxu0 %v288
    %629 = vmatpush.msra.mxu0 %v287
    %630 = vmatmul.f32.gmra.mxu0 %v526
    %v631 = vpop.f32.mrf.mxu0
    %v632 = vadd.f32 %v293, %v631
    %633 = vdwg.mxu0
    %v634 = vmul.f32 %v589, %v632
    %v635 = vadd.f32 %v613, %v634
    %v636 = vtanh.pop %v635
    %v637 = vsub.f32 %v522, %v636
    %v638 = vmul.f32 %v611, %v637
    %v639 = vadd.f32 %v636, %v638
    %s640 = scalar_lea.vmem [#allocation5], 16
    %641 = vst.msk [vmem:[%s640] sm:$0xff] %vm154, %v639
    %v643 = vsel %vm154, %v639, 0
    %645 = vmatpush.msra.mxu0 0.0
    %646 = vmatpush.msra.mxu0 0.0
    %647 = vmatpush.msra.mxu0 0.0
    %648 = vmatpush.msra.mxu0 0.0
    %649 = vmatpush.msra.mxu0 0.0
    %650 = vmatpush.msra.mxu0 0.0
    %651 = vmatpush.msra.mxu0 0.0
    %652 = vmatpush.msra.mxu0 0.0
    %653 = vmatpush.msra.mxu0 0.0
    %654 = vmatpush.msra.mxu0 0.0
    %655 = vmatpush.msra.mxu0 0.0
    %656 = vmatpush.msra.mxu0 0.0
    %657 = vmatpush.msra.mxu0 %v280
    %658 = vmatpush.msra.mxu0 %v279
    %659 = vmatpush.msra.mxu0 %v278
    %660 = vmatpush.msra.mxu0 %v277
    %661 = vmatmul.f32.gmra.mxu0 %v643
    %v662 = vpop.f32.mrf.mxu0
    %v663 = vadd.f32 0.0, %v662
    %664 = vdwg.mxu0
    %665 = vmatpush.msra.mxu0 0.0
    %666 = vmatpush.msra.mxu0 0.0
    %667 = vmatpush.msra.mxu0 0.0
    %668 = vmatpush.msra.mxu0 0.0
    %669 = vmatpush.msra.mxu0 0.0
    %670 = vmatpush.msra.mxu0 0.0
    %671 = vmatpush.msra.mxu0 0.0
    %672 = vmatpush.msra.mxu0 0.0
    %673 = vmatpush.msra.mxu0 0.0
    %674 = vmatpush.msra.mxu0 0.0
    %675 = vmatpush.msra.mxu0 0.0
    %676 = vmatpush.msra.mxu0 0.0
    %677 = vmatpush.msra.mxu0 %v285
    %678 = vmatpush.msra.mxu0 %v284
    %679 = vmatpush.msra.mxu0 %v283
    %680 = vmatpush.msra.mxu0 %v282
    %681 = vmatmul.f32.gmra.mxu0 %v643
    %v682 = vpop.f32.mrf.mxu0
    %v683 = vadd.f32 0.0, %v682
    %684 = vdwg.mxu0
    %s685 = scalar_lea.vmem [#allocation2], 24
    %v686 = vld [vmem:[%s685] sm:$0xff]
    %v687 = vadd.f32 %v686, %v663
    %v688 = vxor.u32 %v687, 2147483648
    %v689 = vmul.f32 %v688, 1.442695
    %v690 = vpow.pop %v689
    %v691 = vadd.f32 %v690, 1.0
    %v692 = vrcp.pop %v691
    %v693 = vmul.f32 %v691, %v692
    %v694 = vsub.f32 1.0, %v693
    %v695 = vmul.f32 %v692, %v694
    %v696 = vadd.f32 %v692, %v695
    %vm697 = vweird.f32 %v691
    %vm698 = vweird.f32 %v692
    %vm699 = vmor %vm697, %vm698
    %v700 = vsel %vm699, %v692, %v696
    %v701 = vand.u32 2147483647, %v691
    %vm702 = vcmp.eq.f32.partialorder %v701, 8.507059e+37
    %v703 = vand.u32 %v691, 2147483648
    %v704 = vor.u32 1.1754944e-38, %v703
    %v705 = vsel %vm702, %v704, %v700
    %v706 = vmul.f32 1.0, %v705
    %s707 = scalar_lea.vmem [#allocation3], 24
    %v708 = vld [vmem:[%s707] sm:$0xff]
    %v709 = vadd.f32 %v708, %v683
    %v710 = vxor.u32 %v709, 2147483648
    %v711 = vmul.f32 %v710, 1.442695
    %v712 = vpow.pop %v711
    %v713 = vadd.f32 %v712, 1.0
    %v714 = vrcp.pop %v713
    %v715 = vmul.f32 %v713, %v714
    %v716 = vsub.f32 1.0, %v715
    %v717 = vmul.f32 %v714, %v716
    %v718 = vadd.f32 %v714, %v717
    %vm719 = vweird.f32 %v713
    %vm720 = vweird.f32 %v714
    %vm721 = vmor %vm719, %vm720
    %v722 = vsel %vm721, %v714, %v718
    %v723 = vand.u32 2147483647, %v713
    %vm724 = vcmp.eq.f32.partialorder %v723, 8.507059e+37
    %v725 = vand.u32 %v713, 2147483648
    %v726 = vor.u32 1.1754944e-38, %v725
    %v727 = vsel %vm724, %v726, %v722
    %v728 = vmul.f32 1.0, %v727
    %s729 = scalar_lea.vmem [#allocation4], 24
    %v730 = vld [vmem:[%s729] sm:$0xff]
    %731 = vmatpush.msra.mxu0 0.0
    %732 = vmatpush.msra.mxu0 0.0
    %733 = vmatpush.msra.mxu0 0.0
    %734 = vmatpush.msra.mxu0 0.0
    %735 = vmatpush.msra.mxu0 0.0
    %736 = vmatpush.msra.mxu0 0.0
    %737 = vmatpush.msra.mxu0 0.0
    %738 = vmatpush.msra.mxu0 0.0
    %739 = vmatpush.msra.mxu0 0.0
    %740 = vmatpush.msra.mxu0 0.0
    %741 = vmatpush.msra.mxu0 0.0
    %742 = vmatpush.msra.mxu0 0.0
    %743 = vmatpush.msra.mxu0 %v290
    %744 = vmatpush.msra.mxu0 %v289
    %745 = vmatpush.msra.mxu0 %v288
    %746 = vmatpush.msra.mxu0 %v287
    %747 = vmatmul.f32.gmra.mxu0 %v643
    %v748 = vpop.f32.mrf.mxu0
    %v749 = vadd.f32 %v293, %v748
    %750 = vdwg.mxu0
    %v751 = vmul.f32 %v706, %v749
    %v752 = vadd.f32 %v730, %v751
    %v753 = vtanh.pop %v752
    %v754 = vsub.f32 %v639, %v753
    %v755 = vmul.f32 %v728, %v754
    %v756 = vadd.f32 %v753, %v755
    %s757 = scalar_lea.vmem [#allocation5], 24
    %758 = vst.msk [vmem:[%s757] sm:$0xff] %vm154, %v756
    %v760 = vsel %vm154, %v756, 0
    %762 = vmatpush.msra.mxu0 0.0
    %763 = vmatpush.msra.mxu0 0.0
    %764 = vmatpush.msra.mxu0 0.0
    %765 = vmatpush.msra.mxu0 0.0
    %766 = vmatpush.msra.mxu0 0.0
    %767 = vmatpush.msra.mxu0 0.0
    %768 = vmatpush.msra.mxu0 0.0
    %769 = vmatpush.msra.mxu0 0.0
    %770 = vmatpush.msra.mxu0 0.0
    %771 = vmatpush.msra.mxu0 0.0
    %772 = vmatpush.msra.mxu0 0.0
    %773 = vmatpush.msra.mxu0 0.0
    %774 = vmatpush.msra.mxu0 %v280
    %775 = vmatpush.msra.mxu0 %v279
    %776 = vmatpush.msra.mxu0 %v278
    %777 = vmatpush.msra.mxu0 %v277
    %778 = vmatmul.f32.gmra.mxu0 %v760
    %v779 = vpop.f32.mrf.mxu0
    %v780 = vadd.f32 0.0, %v779
    %781 = vdwg.mxu0
    %782 = vmatpush.msra.mxu0 0.0
    %783 = vmatpush.msra.mxu0 0.0
    %784 = vmatpush.msra.mxu0 0.0
    %785 = vmatpush.msra.mxu0 0.0
    %786 = vmatpush.msra.mxu0 0.0
    %787 = vmatpush.msra.mxu0 0.0
    %788 = vmatpush.msra.mxu0 0.0
    %789 = vmatpush.msra.mxu0 0.0
    %790 = vmatpush.msra.mxu0 0.0
    %791 = vmatpush.msra.mxu0 0.0
    %792 = vmatpush.msra.mxu0 0.0
    %793 = vmatpush.msra.mxu0 0.0
    %794 = vmatpush.msra.mxu0 %v285
    %795 = vmatpush.msra.mxu0 %v284
    %796 = vmatpush.msra.mxu0 %v283
    %797 = vmatpush.msra.mxu0 %v282
    %798 = vmatmul.f32.gmra.mxu0 %v760
    %v799 = vpop.f32.mrf.mxu0
    %v800 = vadd.f32 0.0, %v799
    %801 = vdwg.mxu0
    %s802 = scalar_lea.vmem [#allocation2], 32
    %v803 = vld [vmem:[%s802] sm:$0xff]
    %v804 = vadd.f32 %v803, %v780
    %v805 = vxor.u32 %v804, 2147483648
    %v806 = vmul.f32 %v805, 1.442695
    %v807 = vpow.pop %v806
    %v808 = vadd.f32 %v807, 1.0
    %v809 = vrcp.pop %v808
    %v810 = vmul.f32 %v808, %v809
    %v811 = vsub.f32 1.0, %v810
    %v812 = vmul.f32 %v809, %v811
    %v813 = vadd.f32 %v809, %v812
    %vm814 = vweird.f32 %v808
    %vm815 = vweird.f32 %v809
    %vm816 = vmor %vm814, %vm815
    %v817 = vsel %vm816, %v809, %v813
    %v818 = vand.u32 2147483647, %v808
    %vm819 = vcmp.eq.f32.partialorder %v818, 8.507059e+37
    %v820 = vand.u32 %v808, 2147483648
    %v821 = vor.u32 1.1754944e-38, %v820
    %v822 = vsel %vm819, %v821, %v817
    %v823 = vmul.f32 1.0, %v822
    %s824 = scalar_lea.vmem [#allocation3], 32
    %v825 = vld [vmem:[%s824] sm:$0xff]
    %v826 = vadd.f32 %v825, %v800
    %v827 = vxor.u32 %v826, 2147483648
    %v828 = vmul.f32 %v827, 1.442695
    %v829 = vpow.pop %v828
    %v830 = vadd.f32 %v829, 1.0
    %v831 = vrcp.pop %v830
    %v832 = vmul.f32 %v830, %v831
    %v833 = vsub.f32 1.0, %v832
    %v834 = vmul.f32 %v831, %v833
    %v835 = vadd.f32 %v831, %v834
    %vm836 = vweird.f32 %v830
    %vm837 = vweird.f32 %v831
    %vm838 = vmor %vm836, %vm837
    %v839 = vsel %vm838, %v831, %v835
    %v840 = vand.u32 2147483647, %v830
    %vm841 = vcmp.eq.f32.partialorder %v840, 8.507059e+37
    %v842 = vand.u32 %v830, 2147483648
    %v843 = vor.u32 1.1754944e-38, %v842
    %v844 = vsel %vm841, %v843, %v839
    %v845 = vmul.f32 1.0, %v844
    %s846 = scalar_lea.vmem [#allocation4], 32
    %v847 = vld [vmem:[%s846] sm:$0xff]
    %848 = vmatpush.msra.mxu0 0.0
    %849 = vmatpush.msra.mxu0 0.0
    %850 = vmatpush.msra.mxu0 0.0
    %851 = vmatpush.msra.mxu0 0.0
    %852 = vmatpush.msra.mxu0 0.0
    %853 = vmatpush.msra.mxu0 0.0
    %854 = vmatpush.msra.mxu0 0.0
    %855 = vmatpush.msra.mxu0 0.0
    %856 = vmatpush.msra.mxu0 0.0
    %857 = vmatpush.msra.mxu0 0.0
    %858 = vmatpush.msra.mxu0 0.0
    %859 = vmatpush.msra.mxu0 0.0
    %860 = vmatpush.msra.mxu0 %v290
    %861 = vmatpush.msra.mxu0 %v289
    %862 = vmatpush.msra.mxu0 %v288
    %863 = vmatpush.msra.mxu0 %v287
    %864 = vmatmul.f32.gmra.mxu0 %v760
    %v865 = vpop.f32.mrf.mxu0
    %v866 = vadd.f32 %v293, %v865
    %867 = vdwg.mxu0
    %v868 = vmul.f32 %v823, %v866
    %v869 = vadd.f32 %v847, %v868
    %v870 = vtanh.pop %v869
    %v871 = vsub.f32 %v756, %v870
    %v872 = vmul.f32 %v845, %v871
    %v873 = vadd.f32 %v870, %v872
    %s874 = scalar_lea.vmem [#allocation5], 32
    %875 = vst.msk [vmem:[%s874] sm:$0xff] %vm154, %v873
    %v877 = vsel %vm154, %v873, 0
    %879 = vmatpush.msra.mxu0 0.0
    %880 = vmatpush.msra.mxu0 0.0
    %881 = vmatpush.msra.mxu0 0.0
    %882 = vmatpush.msra.mxu0 0.0
    %883 = vmatpush.msra.mxu0 0.0
    %884 = vmatpush.msra.mxu0 0.0
    %885 = vmatpush.msra.mxu0 0.0
    %886 = vmatpush.msra.mxu0 0.0
    %887 = vmatpush.msra.mxu0 0.0
    %888 = vmatpush.msra.mxu0 0.0
    %889 = vmatpush.msra.mxu0 0.0
    %890 = vmatpush.msra.mxu0 0.0
    %891 = vmatpush.msra.mxu0 %v280
    %892 = vmatpush.msra.mxu0 %v279
    %893 = vmatpush.msra.mxu0 %v278
    %894 = vmatpush.msra.mxu0 %v277
    %895 = vmatmul.f32.gmra.mxu0 %v877
    %v896 = vpop.f32.mrf.mxu0
    %v897 = vadd.f32 0.0, %v896
    %898 = vdwg.mxu0
    %899 = vmatpush.msra.mxu0 0.0
    %900 = vmatpush.msra.mxu0 0.0
    %901 = vmatpush.msra.mxu0 0.0
    %902 = vmatpush.msra.mxu0 0.0
    %903 = vmatpush.msra.mxu0 0.0
    %904 = vmatpush.msra.mxu0 0.0
    %905 = vmatpush.msra.mxu0 0.0
    %906 = vmatpush.msra.mxu0 0.0
    %907 = vmatpush.msra.mxu0 0.0
    %908 = vmatpush.msra.mxu0 0.0
    %909 = vmatpush.msra.mxu0 0.0
    %910 = vmatpush.msra.mxu0 0.0
    %911 = vmatpush.msra.mxu0 %v285
    %912 = vmatpush.msra.mxu0 %v284
    %913 = vmatpush.msra.mxu0 %v283
    %914 = vmatpush.msra.mxu0 %v282
    %915 = vmatmul.f32.gmra.mxu0 %v877
    %v916 = vpop.f32.mrf.mxu0
    %v917 = vadd.f32 0.0, %v916
    %918 = vdwg.mxu0
    %s919 = scalar_lea.vmem [#allocation2], 40
    %v920 = vld [vmem:[%s919] sm:$0xff]
    %v921 = vadd.f32 %v920, %v897
    %v922 = vxor.u32 %v921, 2147483648
    %v923 = vmul.f32 %v922, 1.442695
    %v924 = vpow.pop %v923
    %v925 = vadd.f32 %v924, 1.0
    %v926 = vrcp.pop %v925
    %v927 = vmul.f32 %v925, %v926
    %v928 = vsub.f32 1.0, %v927
    %v929 = vmul.f32 %v926, %v928
    %v930 = vadd.f32 %v926, %v929
    %vm931 = vweird.f32 %v925
    %vm932 = vweird.f32 %v926
    %vm933 = vmor %vm931, %vm932
    %v934 = vsel %vm933, %v926, %v930
    %v935 = vand.u32 2147483647, %v925
    %vm936 = vcmp.eq.f32.partialorder %v935, 8.507059e+37
    %v937 = vand.u32 %v925, 2147483648
    %v938 = vor.u32 1.1754944e-38, %v937
    %v939 = vsel %vm936, %v938, %v934
    %v940 = vmul.f32 1.0, %v939
    %s941 = scalar_lea.vmem [#allocation3], 40
    %v942 = vld [vmem:[%s941] sm:$0xff]
    %v943 = vadd.f32 %v942, %v917
    %v944 = vxor.u32 %v943, 2147483648
    %v945 = vmul.f32 %v944, 1.442695
    %v946 = vpow.pop %v945
    %v947 = vadd.f32 %v946, 1.0
    %v948 = vrcp.pop %v947
    %v949 = vmul.f32 %v947, %v948
    %v950 = vsub.f32 1.0, %v949
    %v951 = vmul.f32 %v948, %v950
    %v952 = vadd.f32 %v948, %v951
    %vm953 = vweird.f32 %v947
    %vm954 = vweird.f32 %v948
    %vm955 = vmor %vm953, %vm954
    %v956 = vsel %vm955, %v948, %v952
    %v957 = vand.u32 2147483647, %v947
    %vm958 = vcmp.eq.f32.partialorder %v957, 8.507059e+37
    %v959 = vand.u32 %v947, 2147483648
    %v960 = vor.u32 1.1754944e-38, %v959
    %v961 = vsel %vm958, %v960, %v956
    %v962 = vmul.f32 1.0, %v961
    %s963 = scalar_lea.vmem [#allocation4], 40
    %v964 = vld [vmem:[%s963] sm:$0xff]
    %965 = vmatpush.msra.mxu0 0.0
    %966 = vmatpush.msra.mxu0 0.0
    %967 = vmatpush.msra.mxu0 0.0
    %968 = vmatpush.msra.mxu0 0.0
    %969 = vmatpush.msra.mxu0 0.0
    %970 = vmatpush.msra.mxu0 0.0
    %971 = vmatpush.msra.mxu0 0.0
    %972 = vmatpush.msra.mxu0 0.0
    %973 = vmatpush.msra.mxu0 0.0
    %974 = vmatpush.msra.mxu0 0.0
    %975 = vmatpush.msra.mxu0 0.0
    %976 = vmatpush.msra.mxu0 0.0
    %977 = vmatpush.msra.mxu0 %v290
    %978 = vmatpush.msra.mxu0 %v289
    %979 = vmatpush.msra.mxu0 %v288
    %980 = vmatpush.msra.mxu0 %v287
    %981 = vmatmul.f32.gmra.mxu0 %v877
    %v982 = vpop.f32.mrf.mxu0
    %v983 = vadd.f32 %v293, %v982
    %984 = vdwg.mxu0
    %v985 = vmul.f32 %v940, %v983
    %v986 = vadd.f32 %v964, %v985
    %v987 = vtanh.pop %v986
    %v988 = vsub.f32 %v873, %v987
    %v989 = vmul.f32 %v962, %v988
    %v990 = vadd.f32 %v987, %v989
    %s991 = scalar_lea.vmem [#allocation5], 40
    %992 = vst.msk [vmem:[%s991] sm:$0xff] %vm154, %v990
    %v994 = vsel %vm154, %v990, 0
    %996 = vmatpush.msra.mxu0 0.0
    %997 = vmatpush.msra.mxu0 0.0
    %998 = vmatpush.msra.mxu0 0.0
    %999 = vmatpush.msra.mxu0 0.0
    %1000 = vmatpush.msra.mxu0 0.0
    %1001 = vmatpush.msra.mxu0 0.0
    %1002 = vmatpush.msra.mxu0 0.0
    %1003 = vmatpush.msra.mxu0 0.0
    %1004 = vmatpush.msra.mxu0 0.0
    %1005 = vmatpush.msra.mxu0 0.0
    %1006 = vmatpush.msra.mxu0 0.0
    %1007 = vmatpush.msra.mxu0 0.0
    %1008 = vmatpush.msra.mxu0 %v280
    %1009 = vmatpush.msra.mxu0 %v279
    %1010 = vmatpush.msra.mxu0 %v278
    %1011 = vmatpush.msra.mxu0 %v277
    %1012 = vmatmul.f32.gmra.mxu0 %v994
    %v1013 = vpop.f32.mrf.mxu0
    %v1014 = vadd.f32 0.0, %v1013
    %1015 = vdwg.mxu0
    %1016 = vmatpush.msra.mxu0 0.0
    %1017 = vmatpush.msra.mxu0 0.0
    %1018 = vmatpush.msra.mxu0 0.0
    %1019 = vmatpush.msra.mxu0 0.0
    %1020 = vmatpush.msra.mxu0 0.0
    %1021 = vmatpush.msra.mxu0 0.0
    %1022 = vmatpush.msra.mxu0 0.0
    %1023 = vmatpush.msra.mxu0 0.0
    %1024 = vmatpush.msra.mxu0 0.0
    %1025 = vmatpush.msra.mxu0 0.0
    %1026 = vmatpush.msra.mxu0 0.0
    %1027 = vmatpush.msra.mxu0 0.0
    %1028 = vmatpush.msra.mxu0 %v285
    %1029 = vmatpush.msra.mxu0 %v284
    %1030 = vmatpush.msra.mxu0 %v283
    %1031 = vmatpush.msra.mxu0 %v282
    %1032 = vmatmul.f32.gmra.mxu0 %v994
    %v1033 = vpop.f32.mrf.mxu0
    %v1034 = vadd.f32 0.0, %v1033
    %1035 = vdwg.mxu0
    %s1036 = scalar_lea.vmem [#allocation2], 48
    %v1037 = vld [vmem:[%s1036] sm:$0xff]
    %v1038 = vadd.f32 %v1037, %v1014
    %v1039 = vxor.u32 %v1038, 2147483648
    %v1040 = vmul.f32 %v1039, 1.442695
    %v1041 = vpow.pop %v1040
    %v1042 = vadd.f32 %v1041, 1.0
    %v1043 = vrcp.pop %v1042
    %v1044 = vmul.f32 %v1042, %v1043
    %v1045 = vsub.f32 1.0, %v1044
    %v1046 = vmul.f32 %v1043, %v1045
    %v1047 = vadd.f32 %v1043, %v1046
    %vm1048 = vweird.f32 %v1042
    %vm1049 = vweird.f32 %v1043
    %vm1050 = vmor %vm1048, %vm1049
    %v1051 = vsel %vm1050, %v1043, %v1047
    %v1052 = vand.u32 2147483647, %v1042
    %vm1053 = vcmp.eq.f32.partialorder %v1052, 8.507059e+37
    %v1054 = vand.u32 %v1042, 2147483648
    %v1055 = vor.u32 1.1754944e-38, %v1054
    %v1056 = vsel %vm1053, %v1055, %v1051
    %v1057 = vmul.f32 1.0, %v1056
    %s1058 = scalar_lea.vmem [#allocation3], 48
    %v1059 = vld [vmem:[%s1058] sm:$0xff]
    %v1060 = vadd.f32 %v1059, %v1034
    %v1061 = vxor.u32 %v1060, 2147483648
    %v1062 = vmul.f32 %v1061, 1.442695
    %v1063 = vpow.pop %v1062
    %v1064 = vadd.f32 %v1063, 1.0
    %v1065 = vrcp.pop %v1064
    %v1066 = vmul.f32 %v1064, %v1065
    %v1067 = vsub.f32 1.0, %v1066
    %v1068 = vmul.f32 %v1065, %v1067
    %v1069 = vadd.f32 %v1065, %v1068
    %vm1070 = vweird.f32 %v1064
    %vm1071 = vweird.f32 %v1065
    %vm1072 = vmor %vm1070, %vm1071
    %v1073 = vsel %vm1072, %v1065, %v1069
    %v1074 = vand.u32 2147483647, %v1064
    %vm1075 = vcmp.eq.f32.partialorder %v1074, 8.507059e+37
    %v1076 = vand.u32 %v1064, 2147483648
    %v1077 = vor.u32 1.1754944e-38, %v1076
    %v1078 = vsel %vm1075, %v1077, %v1073
    %v1079 = vmul.f32 1.0, %v1078
    %s1080 = scalar_lea.vmem [#allocation4], 48
    %v1081 = vld [vmem:[%s1080] sm:$0xff]
    %1082 = vmatpush.msra.mxu0 0.0
    %1083 = vmatpush.msra.mxu0 0.0
    %1084 = vmatpush.msra.mxu0 0.0
    %1085 = vmatpush.msra.mxu0 0.0
    %1086 = vmatpush.msra.mxu0 0.0
    %1087 = vmatpush.msra.mxu0 0.0
    %1088 = vmatpush.msra.mxu0 0.0
    %1089 = vmatpush.msra.mxu0 0.0
    %1090 = vmatpush.msra.mxu0 0.0
    %1091 = vmatpush.msra.mxu0 0.0
    %1092 = vmatpush.msra.mxu0 0.0
    %1093 = vmatpush.msra.mxu0 0.0
    %1094 = vmatpush.msra.mxu0 %v290
    %1095 = vmatpush.msra.mxu0 %v289
    %1096 = vmatpush.msra.mxu0 %v288
    %1097 = vmatpush.msra.mxu0 %v287
    %1098 = vmatmul.f32.gmra.mxu0 %v994
    %v1099 = vpop.f32.mrf.mxu0
    %v1100 = vadd.f32 %v293, %v1099
    %1101 = vdwg.mxu0
    %v1102 = vmul.f32 %v1057, %v1100
    %v1103 = vadd.f32 %v1081, %v1102
    %v1104 = vtanh.pop %v1103
    %v1105 = vsub.f32 %v990, %v1104
    %v1106 = vmul.f32 %v1079, %v1105
    %v1107 = vadd.f32 %v1104, %v1106
    %s1108 = scalar_lea.vmem [#allocation5], 48
    %1109 = vst.msk [vmem:[%s1108] sm:$0xff] %vm154, %v1107
    %v1111 = vsel %vm154, %v1107, 0
    %1113 = vmatpush.msra.mxu0 0.0
    %1114 = vmatpush.msra.mxu0 0.0
    %1115 = vmatpush.msra.mxu0 0.0
    %1116 = vmatpush.msra.mxu0 0.0
    %1117 = vmatpush.msra.mxu0 0.0
    %1118 = vmatpush.msra.mxu0 0.0
    %1119 = vmatpush.msra.mxu0 0.0
    %1120 = vmatpush.msra.mxu0 0.0
    %1121 = vmatpush.msra.mxu0 0.0
    %1122 = vmatpush.msra.mxu0 0.0
    %1123 = vmatpush.msra.mxu0 0.0
    %1124 = vmatpush.msra.mxu0 0.0
    %1125 = vmatpush.msra.mxu0 %v280
    %1126 = vmatpush.msra.mxu0 %v279
    %1127 = vmatpush.msra.mxu0 %v278
    %1128 = vmatpush.msra.mxu0 %v277
    %1129 = vmatmul.f32.gmra.mxu0 %v1111
    %v1130 = vpop.f32.mrf.mxu0
    %v1131 = vadd.f32 0.0, %v1130
    %1132 = vdwg.mxu0
    %1133 = vmatpush.msra.mxu0 0.0
    %1134 = vmatpush.msra.mxu0 0.0
    %1135 = vmatpush.msra.mxu0 0.0
    %1136 = vmatpush.msra.mxu0 0.0
    %1137 = vmatpush.msra.mxu0 0.0
    %1138 = vmatpush.msra.mxu0 0.0
    %1139 = vmatpush.msra.mxu0 0.0
    %1140 = vmatpush.msra.mxu0 0.0
    %1141 = vmatpush.msra.mxu0 0.0
    %1142 = vmatpush.msra.mxu0 0.0
    %1143 = vmatpush.msra.mxu0 0.0
    %1144 = vmatpush.msra.mxu0 0.0
    %1145 = vmatpush.msra.mxu0 %v285
    %1146 = vmatpush.msra.mxu0 %v284
    %1147 = vmatpush.msra.mxu0 %v283
    %1148 = vmatpush.msra.mxu0 %v282
    %1149 = vmatmul.f32.gmra.mxu0 %v1111
    %v1150 = vpop.f32.mrf.mxu0
    %v1151 = vadd.f32 0.0, %v1150
    %1152 = vdwg.mxu0
    %s1153 = scalar_lea.vmem [#allocation2], 56
    %v1154 = vld [vmem:[%s1153] sm:$0xff]
    %v1155 = vadd.f32 %v1154, %v1131
    %v1156 = vxor.u32 %v1155, 2147483648
    %v1157 = vmul.f32 %v1156, 1.442695
    %v1158 = vpow.pop %v1157
    %v1159 = vadd.f32 %v1158, 1.0
    %v1160 = vrcp.pop %v1159
    %v1161 = vmul.f32 %v1159, %v1160
    %v1162 = vsub.f32 1.0, %v1161
    %v1163 = vmul.f32 %v1160, %v1162
    %v1164 = vadd.f32 %v1160, %v1163
    %vm1165 = vweird.f32 %v1159
    %vm1166 = vweird.f32 %v1160
    %vm1167 = vmor %vm1165, %vm1166
    %v1168 = vsel %vm1167, %v1160, %v1164
    %v1169 = vand.u32 2147483647, %v1159
    %vm1170 = vcmp.eq.f32.partialorder %v1169, 8.507059e+37
    %v1171 = vand.u32 %v1159, 2147483648
    %v1172 = vor.u32 1.1754944e-38, %v1171
    %v1173 = vsel %vm1170, %v1172, %v1168
    %v1174 = vmul.f32 1.0, %v1173
    %s1175 = scalar_lea.vmem [#allocation3], 56
    %v1176 = vld [vmem:[%s1175] sm:$0xff]
    %v1177 = vadd.f32 %v1176, %v1151
    %v1178 = vxor.u32 %v1177, 2147483648
    %v1179 = vmul.f32 %v1178, 1.442695
    %v1180 = vpow.pop %v1179
    %v1181 = vadd.f32 %v1180, 1.0
    %v1182 = vrcp.pop %v1181
    %v1183 = vmul.f32 %v1181, %v1182
    %v1184 = vsub.f32 1.0, %v1183
    %v1185 = vmul.f32 %v1182, %v1184
    %v1186 = vadd.f32 %v1182, %v1185
    %vm1187 = vweird.f32 %v1181
    %vm1188 = vweird.f32 %v1182
    %vm1189 = vmor %vm1187, %vm1188
    %v1190 = vsel %vm1189, %v1182, %v1186
    %v1191 = vand.u32 2147483647, %v1181
    %vm1192 = vcmp.eq.f32.partialorder %v1191, 8.507059e+37
    %v1193 = vand.u32 %v1181, 2147483648
    %v1194 = vor.u32 1.1754944e-38, %v1193
    %v1195 = vsel %vm1192, %v1194, %v1190
    %v1196 = vmul.f32 1.0, %v1195
    %s1197 = scalar_lea.vmem [#allocation4], 56
    %v1198 = vld [vmem:[%s1197] sm:$0xff]
    %1199 = vmatpush.msra.mxu0 0.0
    %1200 = vmatpush.msra.mxu0 0.0
    %1201 = vmatpush.msra.mxu0 0.0
    %1202 = vmatpush.msra.mxu0 0.0
    %1203 = vmatpush.msra.mxu0 0.0
    %1204 = vmatpush.msra.mxu0 0.0
    %1205 = vmatpush.msra.mxu0 0.0
    %1206 = vmatpush.msra.mxu0 0.0
    %1207 = vmatpush.msra.mxu0 0.0
    %1208 = vmatpush.msra.mxu0 0.0
    %1209 = vmatpush.msra.mxu0 0.0
    %1210 = vmatpush.msra.mxu0 0.0
    %1211 = vmatpush.msra.mxu0 %v290
    %1212 = vmatpush.msra.mxu0 %v289
    %1213 = vmatpush.msra.mxu0 %v288
    %1214 = vmatpush.msra.mxu0 %v287
    %1215 = vmatmul.f32.gmra.mxu0 %v1111
    %v1216 = vpop.f32.mrf.mxu0
    %v1217 = vadd.f32 %v293, %v1216
    %1218 = vdwg.mxu0
    %v1219 = vmul.f32 %v1174, %v1217
    %v1220 = vadd.f32 %v1198, %v1219
    %v1221 = vtanh.pop %v1220
    %v1222 = vsub.f32 %v1107, %v1221
    %v1223 = vmul.f32 %v1196, %v1222
    %v1224 = vadd.f32 %v1221, %v1223
    %s1225 = scalar_lea.vmem [#allocation5], 56
    %1226 = vst.msk [vmem:[%s1225] sm:$0xff] %vm154, %v1224
    %v1227 = vld [vmem:[#allocation5] sm:$0xff]
    %v1228 = vld [vmem:[#allocation5 + $0x8] sm:$0xff]
    %v1229 = vld [vmem:[#allocation5 + $0x10] sm:$0xff]
    %v1230 = vld [vmem:[#allocation5 + $0x18] sm:$0xff]
    %v1231 = vld [vmem:[#allocation5 + $0x20] sm:$0xff]
    %v1232 = vld [vmem:[#allocation5 + $0x28] sm:$0xff]
    %v1233 = vld [vmem:[#allocation5 + $0x30] sm:$0xff]
    %v1234 = vld [vmem:[#allocation5 + $0x38] sm:$0xff]
    %v1235 = vld [vmem:[%s5] sm:$0xff]
    %v1236 = vld [vmem:[%s5 + $0x8] sm:$0xff]
    %v1237 = vld [vmem:[%s5 + $0x10] sm:$0xff]
    %v1238 = vld [vmem:[%s5 + $0x18] sm:$0xff]
    %v1239 = vld [vmem:[%s6] sm:$0x1]
    %v1241 = vperm.slane %v1239, 0
    %v1244 = vsel %vm154, %v1227, 0
    %v1247 = vsel %vm154, %v1228, 0
    %v1250 = vsel %vm154, %v1229, 0
    %v1253 = vsel %vm154, %v1230, 0
    %v1256 = vsel %vm154, %v1231, 0
    %v1259 = vsel %vm154, %v1232, 0
    %v1262 = vsel %vm154, %v1233, 0
    %v1265 = vsel %vm154, %v1234, 0
    %1267 = vmatpush.msra.mxu0 0.0
    %1268 = vmatpush.msra.mxu0 0.0
    %1269 = vmatpush.msra.mxu0 0.0
    %1270 = vmatpush.msra.mxu0 0.0
    %1271 = vmatpush.msra.mxu0 0.0
    %1272 = vmatpush.msra.mxu0 0.0
    %1273 = vmatpush.msra.mxu0 0.0
    %1274 = vmatpush.msra.mxu0 0.0
    %1275 = vmatpush.msra.mxu0 0.0
    %1276 = vmatpush.msra.mxu0 0.0
    %1277 = vmatpush.msra.mxu0 0.0
    %1278 = vmatpush.msra.mxu0 0.0
    %1279 = vmatpush.msra.mxu0 %v1238
    %1280 = vmatpush.msra.mxu0 %v1237
    %1281 = vmatpush.msra.mxu0 %v1236
    %1282 = vmatpush.msra.mxu0 %v1235
    %1283 = vmatmul.f32.gmra.mxu0 %v1244
    %v1284 = vpop.f32.mrf.mxu0
    %v1285 = vadd.f32 %v1241, %v1284
    %1286 = vmatmul.f32.gmra.mxu0 %v1247
    %v1287 = vpop.f32.mrf.mxu0
    %v1288 = vadd.f32 %v1241, %v1287
    %1289 = vmatmul.f32.gmra.mxu0 %v1250
    %v1290 = vpop.f32.mrf.mxu0
    %v1291 = vadd.f32 %v1241, %v1290
    %1292 = vmatmul.f32.gmra.mxu0 %v1253
    %v1293 = vpop.f32.mrf.mxu0
    %v1294 = vadd.f32 %v1241, %v1293
    %1295 = vmatmul.f32.gmra.mxu0 %v1256
    %v1296 = vpop.f32.mrf.mxu0
    %v1297 = vadd.f32 %v1241, %v1296
    %1298 = vmatmul.f32.gmra.mxu0 %v1259
    %v1299 = vpop.f32.mrf.mxu0
    %v1300 = vadd.f32 %v1241, %v1299
    %1301 = vmatmul.f32.gmra.mxu0 %v1262
    %v1302 = vpop.f32.mrf.mxu0
    %v1303 = vadd.f32 %v1241, %v1302
    %1304 = vmatmul.f32.gmra.mxu0 %v1265
    %v1305 = vpop.f32.mrf.mxu0
    %v1306 = vadd.f32 %v1241, %v1305
    %1307 = vdwg.mxu0
    %vm1308 = vcmask 64512
    %1309 = vst.msk [vmem:[#allocation12] sm:$0xff] %vm1308, %v1285
    %1310 = vst.msk [vmem:[#allocation12 + $0x8] sm:$0xff] %vm1308, %v1288
    %1311 = vst.msk [vmem:[#allocation12 + $0x10] sm:$0xff] %vm1308, %v1291
    %1312 = vst.msk [vmem:[#allocation12 + $0x18] sm:$0xff] %vm1308, %v1294
    %1313 = vst.msk [vmem:[#allocation12 + $0x20] sm:$0xff] %vm1308, %v1297
    %1314 = vst.msk [vmem:[#allocation12 + $0x28] sm:$0xff] %vm1308, %v1300
    %1315 = vst.msk [vmem:[#allocation12 + $0x30] sm:$0xff] %vm1308, %v1303
    %1316 = vst.msk [vmem:[#allocation12 + $0x38] sm:$0xff] %vm1308, %v1306
    // Predicated region
    $region42: #{tpu_custom_call.1} parent=1 // pred_check
      _
    $region43: #{tpu_custom_call.1} parent=1 // pred_check_branch
      %1318 = sbr.rel (0) target = $region45
    $region44: #{tpu_custom_call.1} parent=1 // pred_region
      %1320 = vsyncadd [#allocation8], 0
      %s1321 = sshll.u32 [#allocation12], 4
      %s1322 = int_to_ptr.vmem [resolvable:$true] %s1321
      %s1323 = sshll.u32 %s7, 4
      %s1324 = int_to_ptr.hbm [resolvable:$true] %s1323
      %1329 = dma.vmem_to_hbm [thread:$0]  %s1322, 1024, %s1324, [#allocation8], 128, 128, 8
    $region45: #{tpu_custom_call.1} parent=1 // pred_fallthru
      _
    // Predicated region
    $region46: #{tpu_custom_call.1} parent=1 // pred_check
      _
    $region47: #{tpu_custom_call.1} parent=1 // pred_check_branch
      %1331 = sbr.rel (0) target = $region49
    $region48: #{tpu_custom_call.1} parent=1 // pred_region
      %1333 = dma.done [#allocation8], 1024
    $region49: #{tpu_custom_call.1} parent=1 // pred_fallthru
      _
    %1334 = vsyncpa [#allocation7], 1
    %1335 = vsyncpa [#allocation10], 1
    %1336 = vsyncpa [#allocation8], 1

</llo_original>
